<compile_context>
chip_gen: v7x
topology: tpu7x:2x2x1
jax: 0.10.0
libtpu: 0.0.40
codegen_flags: <defaults>
</compile_context>

<pallas_src>
import jax
import jax.numpy as jnp
from jax.experimental import pallas as pl
from jax.experimental.pallas import tpu as pltpu  # noqa: F401  (kept for TPU-specific tuning hooks)

# ----- small, module-consistent hyperparameters -----
N_HEAD = 2
D_HEAD = 16
D_MODEL = 32            # = n_head * d_head (typical Transformer-XL setting)
D_INNER = 64
QLEN = 8
BSZ = 2
KLEN = QLEN             # mems=None -> klen == qlen
HD = N_HEAD * D_HEAD
SCALE = 1.0 / (D_HEAD ** 0.5)
LN_EPS = 1e-5
NEG_BIAS = -1e30        # finite additive mask (avoids -inf/NaN hazards)

# TODO(synk): if scaled to real Transformer-XL dims, cast matmul operands to bf16
# (keep preferred_element_type=f32) for native MXU rate.


def _layer_norm(x, g, b):
    mu = jnp.mean(x, axis=-1, keepdims=True)
    var = jnp.mean((x - mu) * (x - mu), axis=-1, keepdims=True)
    return (x - mu) * jax.lax.rsqrt(var + LN_EPS) * g + b


def _fused_layer_kernel(x_ref, wqkv_ref, r_emb_ref, r_w_bias_ref, r_bias_ref,
                        mask_ref, wo_ref, ln1g_ref, ln1b_ref,
                        w1_ref, b1_ref, w2_ref, b2_ref, ln2g_ref, ln2b_ref,
                        out_ref):
    # ---- batch-major activation slab (B*Q, D) built from seq-major input (Q, B, D) ----
    x = x_ref[...]                                                     # (Q, B, D)
    x2d = jnp.concatenate([x[:, b, :] for b in range(BSZ)], axis=0)    # (BQ, D), rows b*Q+i

    # ---- QKV projection: one MXU pass over all tokens of all batches ----
    wh = jnp.dot(x2d, wqkv_ref[...], preferred_element_type=jnp.float32)   # (BQ, 3*HD)
    q2d = wh[:, :HD]
    k2d = wh[:, HD:2 * HD]
    v2d = wh[:, 2 * HD:]                      # V stays in VMEM, never hits HBM

    # q + r_w_bias (build one head-major (1, HD) bias row, add to all rows)
    rwb = r_w_bias_ref[...]                                            # (H, Dh)
    rwb_row = jnp.concatenate([rwb[h:h + 1, :] for h in range(N_HEAD)], axis=1)
    rwq2d = q2d + rwb_row

    def split_heads(t2d):
        # (BQ, HD) -> (H*B, Q, Dh); combined batch index = h*B + b
        return jnp.concatenate(
            [t2d[:, h * D_HEAD:(h + 1) * D_HEAD].reshape(BSZ, QLEN, D_HEAD)
             for h in range(N_HEAD)], axis=0)

    rwq_hb = split_heads(rwq2d)                                        # (HB, Q, Dh)
    k_hb = split_heads(k2d)                                            # (HB, K, Dh)
    v_hb = split_heads(v2d)                                            # (HB, K, Dh)

    # ---- AC = einsum('ibnd,jbnd->ijbn'), batched over all (head, batch) at once ----
    ac_hb = jnp.einsum('bqd,bkd->bqk', rwq_hb, k_hb,
                       preferred_element_type=jnp.float32)             # (HB, Q, K)

    # ---- B_ + D_ in unshifted relative coordinates m ----
    rb_all = r_bias_ref[...]                                           # (H, K)
    bpd_blocks = []
    for h in range(N_HEAD):
        q_h = q2d[:, h * D_HEAD:(h + 1) * D_HEAD]                      # (BQ, Dh)
        b_h = jax.lax.dot_general(q_h, r_emb_ref[h], (((1,), (1,)), ((), ())),
                                  preferred_element_type=jnp.float32)  # (BQ, K)
        bpd_blocks.append((b_h + rb_all[h:h + 1, :]).reshape(BSZ, QLEN, KLEN))
    bpd_hb = jnp.concatenate(bpd_blocks, axis=0)                       # (HB, Q, M)

    # ---- relative shift, in-kernel: BD[i, j] = BPD[i, j + K-1-i] for valid j <= i ----
    # (positions j > i are causally masked below, so they are produced as 0 here;
    #  the reference's wrap-around garbage at those positions is likewise discarded.)
    ii = jax.lax.broadcasted_iota(jnp.int32, (QLEN, KLEN, KLEN), 0)
    mm = jax.lax.broadcasted_iota(jnp.int32, (QLEN, KLEN, KLEN), 1)
    jj = jax.lax.broadcasted_iota(jnp.int32, (QLEN, KLEN, KLEN), 2)
    shift_ind = (ii + mm - jj == KLEN - 1).astype(jnp.float32)         # (Q, M, J)
    bd_hb = jnp.sum(bpd_hb[:, :, :, None] * shift_ind[None, :, :, :], axis=2)  # (HB, Q, K)

    # ---- masked softmax over klen (additive mask bias, EUP reciprocal) ----
    mask_bias = mask_ref[...] * jnp.float32(NEG_BIAS)                  # (Q, K), 0 / -1e30
    scores = (ac_hb + bd_hb) * SCALE + mask_bias[None, :, :]           # (HB, Q, K)
    m = jnp.max(scores, axis=-1, keepdims=True)
    p = jnp.exp(scores - m)
    denom = jnp.sum(p, axis=-1, keepdims=True)
    probs = p * pl.reciprocal(denom, approx=True)
    # TODO(synk): dropatt omitted (inference / eval-mode identity).

    # ---- attention output, batched over all (head, batch) ----
    ctx_hb = jnp.einsum('bqk,bkd->bqd', probs, v_hb,
                        preferred_element_type=jnp.float32)            # (HB, Q, Dh)
    attn_vec = jnp.concatenate(
        [ctx_hb[h * BSZ:(h + 1) * BSZ].reshape(BSZ * QLEN, D_HEAD)
         for h in range(N_HEAD)], axis=1)                              # (BQ, HD)

    # ---- output projection + residual + LayerNorm (post-norm, pre_lnorm=False) ----
    attn_out = jnp.dot(attn_vec, wo_ref[...], preferred_element_type=jnp.float32)
    out1 = _layer_norm(x2d + attn_out, ln1g_ref[...], ln1b_ref[...])
    # TODO(synk): attention-output dropout omitted (inference identity).

    # ---- position-wise FF + residual + LayerNorm ----
    h1 = jnp.maximum(
        jnp.dot(out1, w1_ref[...], preferred_element_type=jnp.float32) + b1_ref[...], 0.0)
    h2 = jnp.dot(h1, w2_ref[...], preferred_element_type=jnp.float32) + b2_ref[...]
    out2d = _layer_norm(out1 + h2, ln2g_ref[...], ln2b_ref[...])
    # TODO(synk): FF dropouts omitted (inference identity).

    # ---- write back in the module's seq-major [Q, B, D] layout (2 stores total) ----
    for b in range(BSZ):
        out_ref[:, b, :] = out2d[b * QLEN:(b + 1) * QLEN, :]


# ---------------- wrapper: a single grid-less pallas_call ----------------
def rel_learnable_decoder_layer(dec_inp, r_emb, r_w_bias, r_bias, dec_attn_mask, params):
    # Only tiny parameter-layout transforms happen outside the kernel; the
    # activation path (dec_inp -> output) is a single fused kernel with no
    # HBM intermediates and no wrapper transposes.
    r_emb_h = jnp.transpose(r_emb, (1, 0, 2))        # (H, K, Dh)   (16*16 floats)
    r_bias_h = jnp.transpose(r_bias, (1, 0))         # (H, K)       (16 floats)
    mask_f = dec_attn_mask.astype(jnp.float32)       # (Q, K), 1.0 == masked

    return pl.pallas_call(
        _fused_layer_kernel,
        out_shape=jax.ShapeDtypeStruct((QLEN, BSZ, D_MODEL), jnp.float32),
    )(dec_inp, params["w_qkv"], r_emb_h, r_w_bias, r_bias_h, mask_f,
      params["w_o"], params["ln1_g"], params["ln1_b"],
      params["w1"], params["b1"], params["w2"], params["b2"],
      params["ln2_g"], params["ln2_b"])


if __name__ == "__main__":
    key = jax.random.PRNGKey(0)
    keys = jax.random.split(key, 16)

    dec_inp = jax.random.normal(keys[0], (QLEN, BSZ, D_MODEL), jnp.float32)
    r_emb = 0.1 * jax.random.normal(keys[1], (KLEN, N_HEAD, D_HEAD), jnp.float32)
    r_w_bias = 0.1 * jax.random.normal(keys[2], (N_HEAD, D_HEAD), jnp.float32)
    r_bias = 0.1 * jax.random.normal(keys[3], (KLEN, N_HEAD), jnp.float32)

    # causal decoder mask: True where masked (j > i), same as torch.triu(ones, diagonal=1).bool()
    ii = jnp.arange(QLEN)[:, None]
    jj = jnp.arange(KLEN)[None, :]
    dec_attn_mask = jj > ii

    params = {
        "w_qkv": 0.05 * jax.random.normal(keys[4], (D_MODEL, 3 * HD), jnp.float32),
        "w_o":   0.05 * jax.random.normal(keys[5], (HD, D_MODEL), jnp.float32),
        "ln1_g": jnp.ones((1, D_MODEL), jnp.float32)
                 + 0.01 * jax.random.normal(keys[6], (1, D_MODEL), jnp.float32),
        "ln1_b": 0.01 * jax.random.normal(keys[7], (1, D_MODEL), jnp.float32),
        "w1":    0.05 * jax.random.normal(keys[8], (D_MODEL, D_INNER), jnp.float32),
        "b1":    0.01 * jax.random.normal(keys[9], (1, D_INNER), jnp.float32),
        "w2":    0.05 * jax.random.normal(keys[10], (D_INNER, D_MODEL), jnp.float32),
        "b2":    0.01 * jax.random.normal(keys[11], (1, D_MODEL), jnp.float32),
        "ln2_g": jnp.ones((1, D_MODEL), jnp.float32)
                 + 0.01 * jax.random.normal(keys[12], (1, D_MODEL), jnp.float32),
        "ln2_b": 0.01 * jax.random.normal(keys[13], (1, D_MODEL), jnp.float32),
    }

    out = jax.jit(rel_learnable_decoder_layer)(
        dec_inp, r_emb, r_w_bias, r_bias, dec_attn_mask, params)
    out = jax.block_until_ready(out)

    assert out.shape == (QLEN, BSZ, D_MODEL)
    assert bool(jnp.all(jnp.isfinite(out)))
    print("KERNEL_OK")
</pallas_src>

<mosaic_0001>
module attributes {stable_mosaic.version = 11 : i64} {
  func.func @_fused_layer_kernel(%arg0: memref<8x2x32xf32, #tpu.memory_space<vmem>>, %arg1: memref<32x96xf32, #tpu.memory_space<vmem>>, %arg2: memref<2x8x16xf32, #tpu.memory_space<vmem>>, %arg3: memref<2x16xf32, #tpu.memory_space<vmem>>, %arg4: memref<2x8xf32, #tpu.memory_space<vmem>>, %arg5: memref<8x8xf32, #tpu.memory_space<vmem>>, %arg6: memref<32x32xf32, #tpu.memory_space<vmem>>, %arg7: memref<1x32xf32, #tpu.memory_space<vmem>>, %arg8: memref<1x32xf32, #tpu.memory_space<vmem>>, %arg9: memref<32x64xf32, #tpu.memory_space<vmem>>, %arg10: memref<1x64xf32, #tpu.memory_space<vmem>>, %arg11: memref<64x32xf32, #tpu.memory_space<vmem>>, %arg12: memref<1x32xf32, #tpu.memory_space<vmem>>, %arg13: memref<1x32xf32, #tpu.memory_space<vmem>>, %arg14: memref<1x32xf32, #tpu.memory_space<vmem>>, %arg15: memref<8x2x32xf32, #tpu.memory_space<vmem>>) attributes {dimension_semantics = [], scalar_prefetch = 0 : i64, scratch_operands = 0 : i64, tpu.core_type = #tpu.core_type<tc>} {
    %c0 = arith.constant 0 : index
    %c0_0 = arith.constant 0 : index
    %c0_1 = arith.constant 0 : index
    %0 = vector.load %arg0[%c0, %c0_0, %c0_1] : memref<8x2x32xf32, #tpu.memory_space<vmem>>, vector<8x2x32xf32>
    %1 = vector.extract_strided_slice %0 {offsets = [0, 0, 0], sizes = [8, 1, 32], strides = [1, 1, 1]} : vector<8x2x32xf32> to vector<8x1x32xf32>
    %2 = vector.shape_cast %1 : vector<8x1x32xf32> to vector<8x32xf32>
    %3 = vector.extract_strided_slice %0 {offsets = [0, 1, 0], sizes = [8, 1, 32], strides = [1, 1, 1]} : vector<8x2x32xf32> to vector<8x1x32xf32>
    %4 = vector.shape_cast %3 : vector<8x1x32xf32> to vector<8x32xf32>
    %5 = tpu.concatenate %2, %4 in 0 : vector<8x32xf32>, vector<8x32xf32> -> vector<16x32xf32>
    %c0_2 = arith.constant 0 : index
    %c0_3 = arith.constant 0 : index
    %6 = vector.load %arg1[%c0_2, %c0_3] : memref<32x96xf32, #tpu.memory_space<vmem>>, vector<32x96xf32>
    %cst = arith.constant dense<0.000000e+00> : vector<16x96xf32>
    %7 = tpu.matmul %5, %6, %cst {dimension_numbers = #tpu.dot_dimension_numbers<[1], [0], [0], [1], [0, 0, 1, 1], [], []>} : vector<16x32xf32>, vector<32x96xf32>, vector<16x96xf32> -> vector<16x96xf32>
    %8 = vector.extract_strided_slice %7 {offsets = [0, 0], sizes = [16, 32], strides = [1, 1]} : vector<16x96xf32> to vector<16x32xf32>
    %9 = vector.extract_strided_slice %7 {offsets = [0, 32], sizes = [16, 32], strides = [1, 1]} : vector<16x96xf32> to vector<16x32xf32>
    %10 = vector.extract_strided_slice %7 {offsets = [0, 64], sizes = [16, 32], strides = [1, 1]} : vector<16x96xf32> to vector<16x32xf32>
    %c0_4 = arith.constant 0 : index
    %c0_5 = arith.constant 0 : index
    %11 = vector.load %arg3[%c0_4, %c0_5] : memref<2x16xf32, #tpu.memory_space<vmem>>, vector<2x16xf32>
    %12 = vector.extract_strided_slice %11 {offsets = [0, 0], sizes = [1, 16], strides = [1, 1]} : vector<2x16xf32> to vector<1x16xf32>
    %13 = vector.extract_strided_slice %11 {offsets = [1, 0], sizes = [1, 16], strides = [1, 1]} : vector<2x16xf32> to vector<1x16xf32>
    %14 = tpu.concatenate %12, %13 in 1 : vector<1x16xf32>, vector<1x16xf32> -> vector<1x32xf32>
    %15 = vector.broadcast %14 : vector<1x32xf32> to vector<16x32xf32>
    %16 = arith.addf %8, %15 : vector<16x32xf32>
    %17 = vector.extract_strided_slice %16 {offsets = [0, 0], sizes = [16, 16], strides = [1, 1]} : vector<16x32xf32> to vector<16x16xf32>
    %18 = vector.shape_cast %17 : vector<16x16xf32> to vector<2x8x16xf32>
    %19 = vector.extract_strided_slice %16 {offsets = [0, 16], sizes = [16, 16], strides = [1, 1]} : vector<16x32xf32> to vector<16x16xf32>
    %20 = vector.shape_cast %19 : vector<16x16xf32> to vector<2x8x16xf32>
    %21 = tpu.concatenate %18, %20 in 0 : vector<2x8x16xf32>, vector<2x8x16xf32> -> vector<4x8x16xf32>
    %22 = vector.extract_strided_slice %9 {offsets = [0, 0], sizes = [16, 16], strides = [1, 1]} : vector<16x32xf32> to vector<16x16xf32>
    %23 = vector.shape_cast %22 : vector<16x16xf32> to vector<2x8x16xf32>
    %24 = vector.extract_strided_slice %9 {offsets = [0, 16], sizes = [16, 16], strides = [1, 1]} : vector<16x32xf32> to vector<16x16xf32>
    %25 = vector.shape_cast %24 : vector<16x16xf32> to vector<2x8x16xf32>
    %26 = tpu.concatenate %23, %25 in 0 : vector<2x8x16xf32>, vector<2x8x16xf32> -> vector<4x8x16xf32>
    %27 = vector.extract_strided_slice %10 {offsets = [0, 0], sizes = [16, 16], strides = [1, 1]} : vector<16x32xf32> to vector<16x16xf32>
    %28 = vector.shape_cast %27 : vector<16x16xf32> to vector<2x8x16xf32>
    %29 = vector.extract_strided_slice %10 {offsets = [0, 16], sizes = [16, 16], strides = [1, 1]} : vector<16x32xf32> to vector<16x16xf32>
    %30 = vector.shape_cast %29 : vector<16x16xf32> to vector<2x8x16xf32>
    %31 = tpu.concatenate %28, %30 in 0 : vector<2x8x16xf32>, vector<2x8x16xf32> -> vector<4x8x16xf32>
    "tpu.trace_start"() <{level = 10 : i32, message = "bqd,bkd->bqk"}> : () -> ()
    %cst_6 = arith.constant dense<0.000000e+00> : vector<4x8x8xf32>
    %32 = tpu.matmul %21, %26, %cst_6 {dimension_numbers = #tpu.dot_dimension_numbers<[2], [2], [1], [1], [0, 0, 0, 1, 1, 1], [0], [0]>} : vector<4x8x16xf32>, vector<4x8x16xf32>, vector<4x8x8xf32> -> vector<4x8x8xf32>
    "tpu.trace_stop"() : () -> ()
    %c0_7 = arith.constant 0 : index
    %c0_8 = arith.constant 0 : index
    %33 = vector.load %arg4[%c0_7, %c0_8] : memref<2x8xf32, #tpu.memory_space<vmem>>, vector<2x8xf32>
    %34 = vector.extract_strided_slice %8 {offsets = [0, 0], sizes = [16, 16], strides = [1, 1]} : vector<16x32xf32> to vector<16x16xf32>
    %c0_9 = arith.constant 0 : index
    %c0_10 = arith.constant 0 : index
    %c0_11 = arith.constant 0 : index
    %35 = vector.load %arg2[%c0_9, %c0_10, %c0_11] : memref<2x8x16xf32, #tpu.memory_space<vmem>>, vector<1x8x16xf32>
    %36 = vector.shape_cast %35 : vector<1x8x16xf32> to vector<8x16xf32>
    %cst_12 = arith.constant dense<0.000000e+00> : vector<16x8xf32>
    %37 = tpu.matmul %34, %36, %cst_12 {dimension_numbers = #tpu.dot_dimension_numbers<[1], [1], [0], [0], [0, 0, 1, 0], [], []>} : vector<16x16xf32>, vector<8x16xf32>, vector<16x8xf32> -> vector<16x8xf32>
    %38 = vector.extract_strided_slice %33 {offsets = [0, 0], sizes = [1, 8], strides = [1, 1]} : vector<2x8xf32> to vector<1x8xf32>
    %39 = vector.broadcast %38 : vector<1x8xf32> to vector<16x8xf32>
    %40 = arith.addf %37, %39 : vector<16x8xf32>
    %41 = vector.shape_cast %40 : vector<16x8xf32> to vector<2x8x8xf32>
    %42 = vector.extract_strided_slice %8 {offsets = [0, 16], sizes = [16, 16], strides = [1, 1]} : vector<16x32xf32> to vector<16x16xf32>
    %c1 = arith.constant 1 : index
    %c0_13 = arith.constant 0 : index
    %c0_14 = arith.constant 0 : index
    %43 = vector.load %arg2[%c1, %c0_13, %c0_14] : memref<2x8x16xf32, #tpu.memory_space<vmem>>, vector<1x8x16xf32>
    %44 = vector.shape_cast %43 : vector<1x8x16xf32> to vector<8x16xf32>
    %cst_15 = arith.constant dense<0.000000e+00> : vector<16x8xf32>
    %45 = tpu.matmul %42, %44, %cst_15 {dimension_numbers = #tpu.dot_dimension_numbers<[1], [1], [0], [0], [0, 0, 1, 0], [], []>} : vector<16x16xf32>, vector<8x16xf32>, vector<16x8xf32> -> vector<16x8xf32>
    %46 = vector.extract_strided_slice %33 {offsets = [1, 0], sizes = [1, 8], strides = [1, 1]} : vector<2x8xf32> to vector<1x8xf32>
    %47 = vector.broadcast %46 : vector<1x8xf32> to vector<16x8xf32>
    %48 = arith.addf %45, %47 : vector<16x8xf32>
    %49 = vector.shape_cast %48 : vector<16x8xf32> to vector<2x8x8xf32>
    %50 = tpu.concatenate %41, %49 in 0 : vector<2x8x8xf32>, vector<2x8x8xf32> -> vector<4x8x8xf32>
    %51 = tpu.iota {dimensions = array<i32: 0>} : vector<8x8x8xi32>
    %52 = tpu.iota {dimensions = array<i32: 1>} : vector<8x8x8xi32>
    %53 = tpu.iota {dimensions = array<i32: 2>} : vector<8x8x8xi32>
    %54 = arith.addi %51, %52 : vector<8x8x8xi32>
    %55 = arith.subi %54, %53 : vector<8x8x8xi32>
    %c7_i32 = arith.constant 7 : i32
    %56 = vector.broadcast %c7_i32 : i32 to vector<8x8x8xi32>
    %57 = arith.cmpi eq, %55, %56 : vector<8x8x8xi32>
    %58 = arith.extui %57 : vector<8x8x8xi1> to vector<8x8x8xi32>
    %59 = arith.sitofp %58 : vector<8x8x8xi32> to vector<8x8x8xf32>
    %60 = vector.shape_cast %50 : vector<4x8x8xf32> to vector<4x8x8x1xf32>
    %61 = vector.shape_cast %59 : vector<8x8x8xf32> to vector<1x8x8x8xf32>
    %62 = vector.broadcast %60 : vector<4x8x8x1xf32> to vector<4x8x8x8xf32>
    %63 = vector.broadcast %61 : vector<1x8x8x8xf32> to vector<4x8x8x8xf32>
    %64 = arith.mulf %62, %63 : vector<4x8x8x8xf32>
    %cst_16 = arith.constant dense<0.000000e+00> : vector<4x8x8xf32>
    %65 = vector.multi_reduction <add>, %64, %cst_16 [2] : vector<4x8x8x8xf32> to vector<4x8x8xf32>
    %c0_17 = arith.constant 0 : index
    %c0_18 = arith.constant 0 : index
    %66 = vector.load %arg5[%c0_17, %c0_18] : memref<8x8xf32, #tpu.memory_space<vmem>>, vector<8x8xf32>
    %cst_19 = arith.constant -1.000000e+30 : f32
    %67 = vector.broadcast %cst_19 : f32 to vector<8x8xf32>
    %68 = arith.mulf %66, %67 : vector<8x8xf32>
    %69 = arith.addf %32, %65 : vector<4x8x8xf32>
    %cst_20 = arith.constant 2.500000e-01 : f32
    %70 = vector.broadcast %cst_20 : f32 to vector<4x8x8xf32>
    %71 = arith.mulf %69, %70 : vector<4x8x8xf32>
    %72 = vector.shape_cast %68 : vector<8x8xf32> to vector<1x8x8xf32>
    %73 = vector.broadcast %72 : vector<1x8x8xf32> to vector<4x8x8xf32>
    %74 = arith.addf %71, %73 : vector<4x8x8xf32>
    %cst_21 = arith.constant dense<0xFF800000> : vector<4x8xf32>
    %75 = vector.multi_reduction <maximumf>, %74, %cst_21 [2] : vector<4x8x8xf32> to vector<4x8xf32>
    %76 = vector.shape_cast %75 : vector<4x8xf32> to vector<4x8x1xf32>
    %77 = vector.broadcast %76 : vector<4x8x1xf32> to vector<4x8x8xf32>
    %78 = arith.subf %74, %77 : vector<4x8x8xf32>
    %79 = math.exp %78 : vector<4x8x8xf32>
    %cst_22 = arith.constant dense<0.000000e+00> : vector<4x8xf32>
    %80 = vector.multi_reduction <add>, %79, %cst_22 [2] : vector<4x8x8xf32> to vector<4x8xf32>
    %81 = vector.shape_cast %80 : vector<4x8xf32> to vector<4x8x1xf32>
    %82 = tpu.reciprocal %81 {approx = true} : vector<4x8x1xf32> -> vector<4x8x1xf32>
    %83 = vector.broadcast %82 : vector<4x8x1xf32> to vector<4x8x8xf32>
    %84 = arith.mulf %79, %83 : vector<4x8x8xf32>
    "tpu.trace_start"() <{level = 10 : i32, message = "bqk,bkd->bqd"}> : () -> ()
    %cst_23 = arith.constant dense<0.000000e+00> : vector<4x8x16xf32>
    %85 = tpu.matmul %84, %31, %cst_23 {dimension_numbers = #tpu.dot_dimension_numbers<[2], [1], [1], [2], [0, 0, 0, 1, 1, 2], [0], [0]>} : vector<4x8x8xf32>, vector<4x8x16xf32>, vector<4x8x16xf32> -> vector<4x8x16xf32>
    "tpu.trace_stop"() : () -> ()
    %86 = vector.extract_strided_slice %85 {offsets = [0, 0, 0], sizes = [2, 8, 16], strides = [1, 1, 1]} : vector<4x8x16xf32> to vector<2x8x16xf32>
    %87 = vector.shape_cast %86 : vector<2x8x16xf32> to vector<16x16xf32>
    %88 = vector.extract_strided_slice %85 {offsets = [2, 0, 0], sizes = [2, 8, 16], strides = [1, 1, 1]} : vector<4x8x16xf32> to vector<2x8x16xf32>
    %89 = vector.shape_cast %88 : vector<2x8x16xf32> to vector<16x16xf32>
    %90 = tpu.concatenate %87, %89 in 1 : vector<16x16xf32>, vector<16x16xf32> -> vector<16x32xf32>
    %c0_24 = arith.constant 0 : index
    %c0_25 = arith.constant 0 : index
    %91 = vector.load %arg6[%c0_24, %c0_25] : memref<32x32xf32, #tpu.memory_space<vmem>>, vector<32x32xf32>
    %cst_26 = arith.constant dense<0.000000e+00> : vector<16x32xf32>
    %92 = tpu.matmul %90, %91, %cst_26 {dimension_numbers = #tpu.dot_dimension_numbers<[1], [0], [0], [1], [0, 0, 1, 1], [], []>} : vector<16x32xf32>, vector<32x32xf32>, vector<16x32xf32> -> vector<16x32xf32>
    %93 = arith.addf %5, %92 : vector<16x32xf32>
    %c0_27 = arith.constant 0 : index
    %c0_28 = arith.constant 0 : index
    %94 = vector.load %arg7[%c0_27, %c0_28] : memref<1x32xf32, #tpu.memory_space<vmem>>, vector<1x32xf32>
    %c0_29 = arith.constant 0 : index
    %c0_30 = arith.constant 0 : index
    %95 = vector.load %arg8[%c0_29, %c0_30] : memref<1x32xf32, #tpu.memory_space<vmem>>, vector<1x32xf32>
    %cst_31 = arith.constant dense<0.000000e+00> : vector<16xf32>
    %96 = vector.multi_reduction <add>, %93, %cst_31 [1] : vector<16x32xf32> to vector<16xf32>
    %97 = vector.shape_cast %96 : vector<16xf32> to vector<16x1xf32>
    %cst_32 = arith.constant 3.200000e+01 : f32
    %98 = vector.broadcast %cst_32 : f32 to vector<16x1xf32>
    %99 = arith.divf %97, %98 : vector<16x1xf32>
    %100 = vector.broadcast %99 : vector<16x1xf32> to vector<16x32xf32>
    %101 = arith.subf %93, %100 : vector<16x32xf32>
    %102 = vector.broadcast %99 : vector<16x1xf32> to vector<16x32xf32>
    %103 = arith.subf %93, %102 : vector<16x32xf32>
    %104 = arith.mulf %101, %103 : vector<16x32xf32>
    %cst_33 = arith.constant dense<0.000000e+00> : vector<16xf32>
    %105 = vector.multi_reduction <add>, %104, %cst_33 [1] : vector<16x32xf32> to vector<16xf32>
    %106 = vector.shape_cast %105 : vector<16xf32> to vector<16x1xf32>
    %cst_34 = arith.constant 3.200000e+01 : f32
    %107 = vector.broadcast %cst_34 : f32 to vector<16x1xf32>
    %108 = arith.divf %106, %107 : vector<16x1xf32>
    %109 = vector.broadcast %99 : vector<16x1xf32> to vector<16x32xf32>
    %110 = arith.subf %93, %109 : vector<16x32xf32>
    %cst_35 = arith.constant 9.99999974E-6 : f32
    %111 = vector.broadcast %cst_35 : f32 to vector<16x1xf32>
    %112 = arith.addf %108, %111 : vector<16x1xf32>
    %113 = math.rsqrt %112 : vector<16x1xf32>
    %114 = vector.broadcast %113 : vector<16x1xf32> to vector<16x32xf32>
    %115 = arith.mulf %110, %114 : vector<16x32xf32>
    %116 = vector.broadcast %94 : vector<1x32xf32> to vector<16x32xf32>
    %117 = arith.mulf %115, %116 : vector<16x32xf32>
    %118 = vector.broadcast %95 : vector<1x32xf32> to vector<16x32xf32>
    %119 = arith.addf %117, %118 : vector<16x32xf32>
    %c0_36 = arith.constant 0 : index
    %c0_37 = arith.constant 0 : index
    %120 = vector.load %arg9[%c0_36, %c0_37] : memref<32x64xf32, #tpu.memory_space<vmem>>, vector<32x64xf32>
    %cst_38 = arith.constant dense<0.000000e+00> : vector<16x64xf32>
    %121 = tpu.matmul %119, %120, %cst_38 {dimension_numbers = #tpu.dot_dimension_numbers<[1], [0], [0], [1], [0, 0, 1, 1], [], []>} : vector<16x32xf32>, vector<32x64xf32>, vector<16x64xf32> -> vector<16x64xf32>
    %c0_39 = arith.constant 0 : index
    %c0_40 = arith.constant 0 : index
    %122 = vector.load %arg10[%c0_39, %c0_40] : memref<1x64xf32, #tpu.memory_space<vmem>>, vector<1x64xf32>
    %123 = vector.broadcast %122 : vector<1x64xf32> to vector<16x64xf32>
    %124 = arith.addf %121, %123 : vector<16x64xf32>
    %cst_41 = arith.constant 0.000000e+00 : f32
    %125 = vector.broadcast %cst_41 : f32 to vector<16x64xf32>
    %126 = arith.maximumf %124, %125 : vector<16x64xf32>
    %c0_42 = arith.constant 0 : index
    %c0_43 = arith.constant 0 : index
    %127 = vector.load %arg11[%c0_42, %c0_43] : memref<64x32xf32, #tpu.memory_space<vmem>>, vector<64x32xf32>
    %cst_44 = arith.constant dense<0.000000e+00> : vector<16x32xf32>
    %128 = tpu.matmul %126, %127, %cst_44 {dimension_numbers = #tpu.dot_dimension_numbers<[1], [0], [0], [1], [0, 0, 1, 1], [], []>} : vector<16x64xf32>, vector<64x32xf32>, vector<16x32xf32> -> vector<16x32xf32>
    %c0_45 = arith.constant 0 : index
    %c0_46 = arith.constant 0 : index
    %129 = vector.load %arg12[%c0_45, %c0_46] : memref<1x32xf32, #tpu.memory_space<vmem>>, vector<1x32xf32>
    %130 = vector.broadcast %129 : vector<1x32xf32> to vector<16x32xf32>
    %131 = arith.addf %128, %130 : vector<16x32xf32>
    %132 = arith.addf %119, %131 : vector<16x32xf32>
    %c0_47 = arith.constant 0 : index
    %c0_48 = arith.constant 0 : index
    %133 = vector.load %arg13[%c0_47, %c0_48] : memref<1x32xf32, #tpu.memory_space<vmem>>, vector<1x32xf32>
    %c0_49 = arith.constant 0 : index
    %c0_50 = arith.constant 0 : index
    %134 = vector.load %arg14[%c0_49, %c0_50] : memref<1x32xf32, #tpu.memory_space<vmem>>, vector<1x32xf32>
    %cst_51 = arith.constant dense<0.000000e+00> : vector<16xf32>
    %135 = vector.multi_reduction <add>, %132, %cst_51 [1] : vector<16x32xf32> to vector<16xf32>
    %136 = vector.shape_cast %135 : vector<16xf32> to vector<16x1xf32>
    %cst_52 = arith.constant 3.200000e+01 : f32
    %137 = vector.broadcast %cst_52 : f32 to vector<16x1xf32>
    %138 = arith.divf %136, %137 : vector<16x1xf32>
    %139 = vector.broadcast %138 : vector<16x1xf32> to vector<16x32xf32>
    %140 = arith.subf %132, %139 : vector<16x32xf32>
    %141 = vector.broadcast %138 : vector<16x1xf32> to vector<16x32xf32>
    %142 = arith.subf %132, %141 : vector<16x32xf32>
    %143 = arith.mulf %140, %142 : vector<16x32xf32>
    %cst_53 = arith.constant dense<0.000000e+00> : vector<16xf32>
    %144 = vector.multi_reduction <add>, %143, %cst_53 [1] : vector<16x32xf32> to vector<16xf32>
    %145 = vector.shape_cast %144 : vector<16xf32> to vector<16x1xf32>
    %cst_54 = arith.constant 3.200000e+01 : f32
    %146 = vector.broadcast %cst_54 : f32 to vector<16x1xf32>
    %147 = arith.divf %145, %146 : vector<16x1xf32>
    %148 = vector.broadcast %138 : vector<16x1xf32> to vector<16x32xf32>
    %149 = arith.subf %132, %148 : vector<16x32xf32>
    %cst_55 = arith.constant 9.99999974E-6 : f32
    %150 = vector.broadcast %cst_55 : f32 to vector<16x1xf32>
    %151 = arith.addf %147, %150 : vector<16x1xf32>
    %152 = math.rsqrt %151 : vector<16x1xf32>
    %153 = vector.broadcast %152 : vector<16x1xf32> to vector<16x32xf32>
    %154 = arith.mulf %149, %153 : vector<16x32xf32>
    %155 = vector.broadcast %133 : vector<1x32xf32> to vector<16x32xf32>
    %156 = arith.mulf %154, %155 : vector<16x32xf32>
    %157 = vector.broadcast %134 : vector<1x32xf32> to vector<16x32xf32>
    %158 = arith.addf %156, %157 : vector<16x32xf32>
    %159 = vector.extract_strided_slice %158 {offsets = [0, 0], sizes = [8, 32], strides = [1, 1]} : vector<16x32xf32> to vector<8x32xf32>
    %c0_56 = arith.constant 0 : index
    %c0_57 = arith.constant 0 : index
    %c0_58 = arith.constant 0 : index
    %160 = vector.load %arg15[%c0_56, %c0_57, %c0_58] : memref<8x2x32xf32, #tpu.memory_space<vmem>>, vector<8x1x32xf32>
    %161 = vector.shape_cast %160 : vector<8x1x32xf32> to vector<8x32xf32>
    %162 = vector.shape_cast %159 : vector<8x32xf32> to vector<8x1x32xf32>
    tpu.vector_store %arg15[%c0_56, %c0_57, %c0_58], %162 {strides = array<i32>} : memref<8x2x32xf32, #tpu.memory_space<vmem>>, vector<8x1x32xf32>,
    %163 = vector.extract_strided_slice %158 {offsets = [8, 0], sizes = [8, 32], strides = [1, 1]} : vector<16x32xf32> to vector<8x32xf32>
    %c0_59 = arith.constant 0 : index
    %c1_60 = arith.constant 1 : index
    %c0_61 = arith.constant 0 : index
    %164 = vector.load %arg15[%c0_59, %c1_60, %c0_61] : memref<8x2x32xf32, #tpu.memory_space<vmem>>, vector<8x1x32xf32>
    %165 = vector.shape_cast %164 : vector<8x1x32xf32> to vector<8x32xf32>
    %166 = vector.shape_cast %163 : vector<8x32xf32> to vector<8x1x32xf32>
    tpu.vector_store %arg15[%c0_59, %c1_60, %c0_61], %166 {strides = array<i32>} : memref<8x2x32xf32, #tpu.memory_space<vmem>>, vector<8x1x32xf32>,
    return
  }
}

</mosaic_0001>

<llo_original>
// kernel: rel_learnable_decoder_layer.1
$region0: #{rel_learnable_decoder_layer.1}
  #allocation0 [shape = 'u32[]', space=smem, size = 0x4, offset = 0x4, fixed_abs, tag = 'smem constant byte address 0x4 - core index']
  #allocation1 [shape = 'u32[144,128]{1,0:T(1,128)}', space=vmem, size = 0x12000, scoped, tag = 'internal scratch']
  %s0 = inlined_call_operand.vmem [shape: f32[8,2,32], index: 0, kind: input, shape index: {}]
  %s1 = inlined_call_operand.vmem [shape: f32[32,96], index: 1, kind: input, shape index: {}]
  %s2 = inlined_call_operand.vmem [shape: f32[2,8,16], index: 2, kind: input, shape index: {}]
  %s3 = inlined_call_operand.vmem [shape: f32[2,16], index: 3, kind: input, shape index: {}]
  %s4 = inlined_call_operand.vmem [shape: f32[2,8], index: 4, kind: input, shape index: {}]
  %s5 = inlined_call_operand.vmem [shape: f32[8,8], index: 5, kind: input, shape index: {}]
  %s6 = inlined_call_operand.vmem [shape: f32[32,32], index: 6, kind: input, shape index: {}]
  %s7 = inlined_call_operand.vmem [shape: f32[1,32], index: 7, kind: input, shape index: {}]
  %s8 = inlined_call_operand.vmem [shape: f32[1,32], index: 8, kind: input, shape index: {}]
  %s9 = inlined_call_operand.vmem [shape: f32[32,64], index: 9, kind: input, shape index: {}]
  %s10 = inlined_call_operand.vmem [shape: f32[1,64], index: 10, kind: input, shape index: {}]
  %s11 = inlined_call_operand.vmem [shape: f32[64,32], index: 11, kind: input, shape index: {}]
  %s12 = inlined_call_operand.vmem [shape: f32[1,32], index: 12, kind: input, shape index: {}]
  %s13 = inlined_call_operand.vmem [shape: f32[1,32], index: 13, kind: input, shape index: {}]
  %s14 = inlined_call_operand.vmem [shape: f32[1,32], index: 14, kind: input, shape index: {}]
  %s15 = inlined_call_operand.hbm [shape: f32[8,2,32], index: 15, kind: output, shape index: {}]
  %s16 = sld [smem:[#allocation0]]
  $region70: #{rel_learnable_decoder_layer.1} parent=0
    _
  %s18 = ssub.s32 1, %s16
  %s19 = scalar_select 0, %s18, %s16
  $region1: #{rel_learnable_decoder_layer.1} parent=0
    #allocation2 [shape = 'u8[8192]{0}', space=vmem, size = 0x2000, scoped, tag = 'output window, operand 0, single buffered']
    #allocation3 [shape = 's32[1]{0}', space=sflag, size = 0x4, scoped, tag = 'scoped memory for rel_learnable_decoder_layer.1']
    %20 = vsyncpa [#allocation3], 0
    // Predicated region
    $region2: #{rel_learnable_decoder_layer.1} parent=1 // pred_check
      _
    $region3: #{rel_learnable_decoder_layer.1} parent=1 // pred_check_branch
      %22 = sbr.rel (0) target = $region5
    $region4: #{rel_learnable_decoder_layer.1} parent=1 // pred_region
      _
    $region5: #{rel_learnable_decoder_layer.1} parent=1 // pred_fallthru
      _
    // Predicated region
    $region6: #{rel_learnable_decoder_layer.1} parent=1 // pred_check
      _
    $region7: #{rel_learnable_decoder_layer.1} parent=1 // pred_check_branch
      %24 = sbr.rel (0) target = $region9
    $region8: #{rel_learnable_decoder_layer.1} parent=1 // pred_region
      _
    $region9: #{rel_learnable_decoder_layer.1} parent=1 // pred_fallthru
      _
    // Predicated region
    $region10: #{rel_learnable_decoder_layer.1} parent=1 // pred_check
      _
    $region11: #{rel_learnable_decoder_layer.1} parent=1 // pred_check_branch
      %26 = sbr.rel (0) target = $region13
    $region12: #{rel_learnable_decoder_layer.1} parent=1 // pred_region
      _
    $region13: #{rel_learnable_decoder_layer.1} parent=1 // pred_fallthru
      _
    // Predicated region
    $region14: #{rel_learnable_decoder_layer.1} parent=1 // pred_check
      _
    $region15: #{rel_learnable_decoder_layer.1} parent=1 // pred_check_branch
      %28 = sbr.rel (0) target = $region17
    $region16: #{rel_learnable_decoder_layer.1} parent=1 // pred_region
      _
    $region17: #{rel_learnable_decoder_layer.1} parent=1 // pred_fallthru
      _
    // Predicated region
    $region18: #{rel_learnable_decoder_layer.1} parent=1 // pred_check
      _
    $region19: #{rel_learnable_decoder_layer.1} parent=1 // pred_check_branch
      %30 = sbr.rel (0) target = $region21
    $region20: #{rel_learnable_decoder_layer.1} parent=1 // pred_region
      _
    $region21: #{rel_learnable_decoder_layer.1} parent=1 // pred_fallthru
      _
    // Predicated region
    $region22: #{rel_learnable_decoder_layer.1} parent=1 // pred_check
      _
    $region23: #{rel_learnable_decoder_layer.1} parent=1 // pred_check_branch
      %32 = sbr.rel (0) target = $region25
    $region24: #{rel_learnable_decoder_layer.1} parent=1 // pred_region
      _
    $region25: #{rel_learnable_decoder_layer.1} parent=1 // pred_fallthru
      _
    // Predicated region
    $region26: #{rel_learnable_decoder_layer.1} parent=1 // pred_check
      _
    $region27: #{rel_learnable_decoder_layer.1} parent=1 // pred_check_branch
      %34 = sbr.rel (0) target = $region29
    $region28: #{rel_learnable_decoder_layer.1} parent=1 // pred_region
      _
    $region29: #{rel_learnable_decoder_layer.1} parent=1 // pred_fallthru
      _
    // Predicated region
    $region30: #{rel_learnable_decoder_layer.1} parent=1 // pred_check
      _
    $region31: #{rel_learnable_decoder_layer.1} parent=1 // pred_check_branch
      %36 = sbr.rel (0) target = $region33
    $region32: #{rel_learnable_decoder_layer.1} parent=1 // pred_region
      _
    $region33: #{rel_learnable_decoder_layer.1} parent=1 // pred_fallthru
      _
    // Predicated region
    $region34: #{rel_learnable_decoder_layer.1} parent=1 // pred_check
      _
    $region35: #{rel_learnable_decoder_layer.1} parent=1 // pred_check_branch
      %38 = sbr.rel (0) target = $region37
    $region36: #{rel_learnable_decoder_layer.1} parent=1 // pred_region
      _
    $region37: #{rel_learnable_decoder_layer.1} parent=1 // pred_fallthru
      _
    // Predicated region
    $region38: #{rel_learnable_decoder_layer.1} parent=1 // pred_check
      _
    $region39: #{rel_learnable_decoder_layer.1} parent=1 // pred_check_branch
      %40 = sbr.rel (0) target = $region41
    $region40: #{rel_learnable_decoder_layer.1} parent=1 // pred_region
      _
    $region41: #{rel_learnable_decoder_layer.1} parent=1 // pred_fallthru
      _
    // Predicated region
    $region42: #{rel_learnable_decoder_layer.1} parent=1 // pred_check
      _
    $region43: #{rel_learnable_decoder_layer.1} parent=1 // pred_check_branch
      %42 = sbr.rel (0) target = $region45
    $region44: #{rel_learnable_decoder_layer.1} parent=1 // pred_region
      _
    $region45: #{rel_learnable_decoder_layer.1} parent=1 // pred_fallthru
      _
    // Predicated region
    $region46: #{rel_learnable_decoder_layer.1} parent=1 // pred_check
      _
    $region47: #{rel_learnable_decoder_layer.1} parent=1 // pred_check_branch
      %44 = sbr.rel (0) target = $region49
    $region48: #{rel_learnable_decoder_layer.1} parent=1 // pred_region
      _
    $region49: #{rel_learnable_decoder_layer.1} parent=1 // pred_fallthru
      _
    // Predicated region
    $region50: #{rel_learnable_decoder_layer.1} parent=1 // pred_check
      _
    $region51: #{rel_learnable_decoder_layer.1} parent=1 // pred_check_branch
      %46 = sbr.rel (0) target = $region53
    $region52: #{rel_learnable_decoder_layer.1} parent=1 // pred_region
      _
    $region53: #{rel_learnable_decoder_layer.1} parent=1 // pred_fallthru
      _
    // Predicated region
    $region54: #{rel_learnable_decoder_layer.1} parent=1 // pred_check
      _
    $region55: #{rel_learnable_decoder_layer.1} parent=1 // pred_check_branch
      %48 = sbr.rel (0) target = $region57
    $region56: #{rel_learnable_decoder_layer.1} parent=1 // pred_region
      _
    $region57: #{rel_learnable_decoder_layer.1} parent=1 // pred_fallthru
      _
    // Predicated region
    $region58: #{rel_learnable_decoder_layer.1} parent=1 // pred_check
      _
    $region59: #{rel_learnable_decoder_layer.1} parent=1 // pred_check_branch
      %50 = sbr.rel (0) target = $region61
    $region60: #{rel_learnable_decoder_layer.1} parent=1 // pred_region
      _
    $region61: #{rel_learnable_decoder_layer.1} parent=1 // pred_fallthru
      _
    %v51 = vld [vmem:[%s0] sm:$0x3]
    %v52 = vld [vmem:[%s0 + $0x2] sm:$0x3]
    %v53 = vld [vmem:[%s0 + $0x4] sm:$0x3]
    %v54 = vld [vmem:[%s0 + $0x6] sm:$0x3]
    %v55 = vld [vmem:[%s0 + $0x8] sm:$0x3]
    %v56 = vld [vmem:[%s0 + $0xa] sm:$0x3]
    %v57 = vld [vmem:[%s0 + $0xc] sm:$0x3]
    %v58 = vld [vmem:[%s0 + $0xe] sm:$0x3]
    %v67 = vrot.slane %v52, 7
    %vm68 = vcmask 1041409
    %v69 = vsel %vm68, %v67, %v51
    %v70 = vrot.slane %v53, 6
    %vm71 = vcmask 1042434
    %v72 = vsel %vm71, %v70, %v69
    %v73 = vrot.slane %v54, 5
    %vm74 = vcmask 1043459
    %v75 = vsel %vm74, %v73, %v72
    %v76 = vrot.slane %v55, 4
    %vm77 = vcmask 1044484
    %v78 = vsel %vm77, %v76, %v75
    %v79 = vrot.slane %v56, 3
    %vm80 = vcmask 1045509
    %v81 = vsel %vm80, %v79, %v78
    %v82 = vrot.slane %v57, 2
    %vm83 = vcmask 1046534
    %v84 = vsel %vm83, %v82, %v81
    %v85 = vrot.slane %v58, 1
    %vm86 = vcmask 1047559
    %v87 = vsel %vm86, %v85, %v84
    %v89 = vrot.slane %v51, 1
    %v90 = vsel %vm68, %v52, %v89
    %v91 = vrot.slane %v53, 7
    %v92 = vsel %vm71, %v91, %v90
    %v93 = vrot.slane %v54, 6
    %v94 = vsel %vm74, %v93, %v92
    %v95 = vrot.slane %v55, 5
    %v96 = vsel %vm77, %v95, %v94
    %v97 = vrot.slane %v56, 4
    %v98 = vsel %vm80, %v97, %v96
    %v99 = vrot.slane %v57, 3
    %v100 = vsel %vm83, %v99, %v98
    %v101 = vrot.slane %v58, 2
    %v102 = vsel %vm86, %v101, %v100
    %v104 = vld [vmem:[%s1] sm:$0xff]
    %v105 = vld [vmem:[%s1 + $0x8] sm:$0xff]
    %v106 = vld [vmem:[%s1 + $0x10] sm:$0xff]
    %v107 = vld [vmem:[%s1 + $0x18] sm:$0xff]
    %vm108 = vcmask 261120
    %v109 = vsel %vm108, %v87, 0
    %v111 = vsel %vm108, %v102, 0
    %113 = vmatprep.subr.mxu0 0.0
    %114 = vmatpush1.msra.mxu0 %v104
    %115 = vmatprep.subr.mxu0 0.0
    %116 = vmatpush1.msra.mxu0 %v105
    %117 = vmatprep.subr.mxu0 0.0
    %118 = vmatpush1.msra.mxu0 %v106
    %119 = vmatprep.subr.mxu0 0.0
    %120 = vmatpush1.msra.mxu0 %v107
    %121 = vmatprep.subr.mxu0 0.0
    %122 = vmatpush1.msra.mxu0 0.0
    %123 = vmatprep.subr.mxu0 0.0
    %124 = vmatpush1.msra.mxu0 0.0
    %125 = vmatprep.subr.mxu0 0.0
    %126 = vmatpush1.msra.mxu0 0.0
    %127 = vmatprep.subr.mxu0 0.0
    %128 = vmatpush1.msra.mxu0 0.0
    %129 = vmatprep.subr.mxu0 0.0
    %130 = vmatpush1.msra.mxu0 0.0
    %131 = vmatprep.subr.mxu0 0.0
    %132 = vmatpush1.msra.mxu0 0.0
    %133 = vmatprep.subr.mxu0 0.0
    %134 = vmatpush1.msra.mxu0 0.0
    %135 = vmatprep.subr.mxu0 0.0
    %136 = vmatpush1.msra.mxu0 0.0
    %137 = vmatprep.subr.mxu0 0.0
    %138 = vmatpush1.msra.mxu0 0.0
    %139 = vmatprep.subr.mxu0 0.0
    %140 = vmatpush1.msra.mxu0 0.0
    %141 = vmatprep.subr.mxu0 0.0
    %142 = vmatpush1.msra.mxu0 0.0
    %143 = vmatprep.subr.mxu0 0.0
    %144 = vmatpush1.msra.mxu0 0.0
    %145 = vmatprep.subr.mxu0 0.0
    %146 = vmatpush1.msra.mxu0 0.0
    %147 = vmatprep.subr.mxu0 0.0
    %148 = vmatpush1.msra.mxu0 0.0
    %149 = vmatprep.subr.mxu0 0.0
    %150 = vmatpush1.msra.mxu0 0.0
    %151 = vmatprep.subr.mxu0 0.0
    %152 = vmatpush1.msra.mxu0 0.0
    %153 = vmatprep.subr.mxu0 0.0
    %154 = vmatpush1.msra.mxu0 0.0
    %155 = vmatprep.subr.mxu0 0.0
    %156 = vmatpush1.msra.mxu0 0.0
    %157 = vmatprep.subr.mxu0 0.0
    %158 = vmatpush1.msra.mxu0 0.0
    %159 = vmatprep.subr.mxu0 0.0
    %160 = vmatpush1.msra.mxu0 0.0
    %161 = vmatprep.subr.mxu0 0.0
    %162 = vmatpush1.msra.mxu0 0.0
    %163 = vmatprep.subr.mxu0 0.0
    %164 = vmatpush1.msra.mxu0 0.0
    %165 = vmatprep.subr.mxu0 0.0
    %166 = vmatpush1.msra.mxu0 0.0
    %167 = vmatprep.subr.mxu0 0.0
    %168 = vmatpush1.msra.mxu0 0.0
    %169 = vmatprep.subr.mxu0 0.0
    %170 = vmatpush1.msra.mxu0 0.0
    %171 = vmatprep.subr.mxu0 0.0
    %172 = vmatpush1.msra.mxu0 0.0
    %173 = vmatprep.subr.mxu0 0.0
    %174 = vmatpush1.msra.mxu0 0.0
    %175 = vmatprep.subr.mxu0 0.0
    %176 = vmatpush1.msra.mxu0 0.0
    %177 = vmatprep.mubr.f32.mxu0 0.0
    %178 = vmatmul.mubr.f32.gmra.mrb[0].mxu0 %v109
    %v179 = vpop.f32.mrb[0].mxu0
    %v180 = vadd.f32 0.0, %v179
    %v181 = vpop.f32.mrb[0].mxu0
    %182 = vmatprep.mubr.f32.mxu0 0.0
    %183 = vmatmul.mubr.f32.gmra.mrb[0].mxu0 %v111
    %v184 = vpop.f32.mrb[0].mxu0
    %v185 = vadd.f32 0.0, %v184
    %v186 = vpop.f32.mrb[0].mxu0
    %187 = vdwg.mxu0
    %v188 = vld [vmem:[%s3] sm:$0x3]
    %v190 = vrot.slane %v188, 1
    %191 = vrot.lane.b32.xlu0 %v190, 16
    %v192 = vpop.permute.xlu0 %191
    %vm194 = vcmask 130048
    %v195 = vsel %vm194, %v188, %v192
    %v196 = vlaneseq
    %v197 = vshrl.u32 %v196, 7
    %v198 = vsub.s32 0, %v197
    %v199 = vrot.slane %v195, %v198
    %v200 = vadd.f32 %v180, %v199
    %v201 = vadd.f32 %v185, %v199
    %204 = vrot.lane.b32.xlu0 %v200, 112
    %v205 = vpop.permute.xlu0 %204
    %206 = vrot.lane.b32.xlu0 %v201, 112
    %v207 = vpop.permute.xlu0 %206
    %210 = vrot.lane.b32.xlu0 %v180, 112
    %v211 = vpop.permute.xlu0 %210
    %212 = vrot.lane.b32.xlu0 %v185, 112
    %v213 = vpop.permute.xlu0 %212
    %v214 = vld [vmem:[%s4] sm:$0x3]
    %v215 = vld [vmem:[%s2] sm:$0xff]
    %v216 = vlaneseq
    %v217 = vshrl.u32 %v216, 7
    %v218 = vsub.s32 0, %v217
    %v219 = vrot.slane %v214, %v218
    %v220 = vsel %vm194, %v180, 0
    %v222 = vsel %vm194, %v185, 0
    %v225 = vsel %vm194, %v215, 0
    %227 = vmatprep.subr.mxu0 0.0
    %228 = vmatpush1.xpose.msra.mxu0 %v225
    %229 = vmatprep.subr.mxu0 0.0
    %230 = vmatpush1.xpose.msra.mxu0 0.0
    %231 = vmatprep.subr.mxu0 0.0
    %232 = vmatpush1.xpose.msra.mxu0 0.0
    %233 = vmatprep.subr.mxu0 0.0
    %234 = vmatpush1.xpose.msra.mxu0 0.0
    %235 = vmatprep.subr.mxu0 0.0
    %236 = vmatpush1.xpose.msra.mxu0 0.0
    %237 = vmatprep.subr.mxu0 0.0
    %238 = vmatpush1.xpose.msra.mxu0 0.0
    %239 = vmatprep.subr.mxu0 0.0
    %240 = vmatpush1.xpose.msra.mxu0 0.0
    %241 = vmatprep.subr.mxu0 0.0
    %242 = vmatpush1.xpose.msra.mxu0 0.0
    %243 = vmatprep.subr.mxu0 0.0
    %244 = vmatpush1.xpose.msra.mxu0 0.0
    %245 = vmatprep.subr.mxu0 0.0
    %246 = vmatpush1.xpose.msra.mxu0 0.0
    %247 = vmatprep.subr.mxu0 0.0
    %248 = vmatpush1.xpose.msra.mxu0 0.0
    %249 = vmatprep.subr.mxu0 0.0
    %250 = vmatpush1.xpose.msra.mxu0 0.0
    %251 = vmatprep.subr.mxu0 0.0
    %252 = vmatpush1.xpose.msra.mxu0 0.0
    %253 = vmatprep.subr.mxu0 0.0
    %254 = vmatpush1.xpose.msra.mxu0 0.0
    %255 = vmatprep.subr.mxu0 0.0
    %256 = vmatpush1.xpose.msra.mxu0 0.0
    %257 = vmatprep.subr.mxu0 0.0
    %258 = vmatpush1.xpose.msra.mxu0 0.0
    %259 = vmatprep.subr.mxu0 0.0
    %260 = vmatpush1.xpose.msra.mxu0 0.0
    %261 = vmatprep.subr.mxu0 0.0
    %262 = vmatpush1.xpose.msra.mxu0 0.0
    %263 = vmatprep.subr.mxu0 0.0
    %264 = vmatpush1.xpose.msra.mxu0 0.0
    %265 = vmatprep.subr.mxu0 0.0
    %266 = vmatpush1.xpose.msra.mxu0 0.0
    %267 = vmatprep.subr.mxu0 0.0
    %268 = vmatpush1.xpose.msra.mxu0 0.0
    %269 = vmatprep.subr.mxu0 0.0
    %270 = vmatpush1.xpose.msra.mxu0 0.0
    %271 = vmatprep.subr.mxu0 0.0
    %272 = vmatpush1.xpose.msra.mxu0 0.0
    %273 = vmatprep.subr.mxu0 0.0
    %274 = vmatpush1.xpose.msra.mxu0 0.0
    %275 = vmatprep.subr.mxu0 0.0
    %276 = vmatpush1.xpose.msra.mxu0 0.0
    %277 = vmatprep.subr.mxu0 0.0
    %278 = vmatpush1.xpose.msra.mxu0 0.0
    %279 = vmatprep.subr.mxu0 0.0
    %280 = vmatpush1.xpose.msra.mxu0 0.0
    %281 = vmatprep.subr.mxu0 0.0
    %282 = vmatpush1.xpose.msra.mxu0 0.0
    %283 = vmatprep.subr.mxu0 0.0
    %284 = vmatpush1.xpose.msra.mxu0 0.0
    %285 = vmatprep.subr.mxu0 0.0
    %286 = vmatpush1.xpose.msra.mxu0 0.0
    %287 = vmatprep.subr.mxu0 0.0
    %288 = vmatpush1.xpose.msra.mxu0 0.0
    %289 = vmatprep.subr.mxu0 0.0
    %290 = vmatpush1.xpose.msra.mxu0 0.0
    %291 = vmatprep.mubr.f32.mxu0 0.0
    %292 = vmatmul.mubr.f32.gmra.mrb[0].mxu0 %v220
    %v293 = vpop.f32.mrb[0].mxu0
    %v294 = vadd.f32 %v219, %v293
    %v295 = vpop.f32.mrb[0].mxu0
    %296 = vmatprep.mubr.f32.mxu0 0.0
    %297 = vmatmul.mubr.f32.gmra.mrb[0].mxu0 %v222
    %v298 = vpop.f32.mrb[0].mxu0
    %v299 = vadd.f32 %v219, %v298
    %v300 = vpop.f32.mrb[0].mxu0
    %301 = vdwg.mxu0
    %s302 = scalar_lea.vmem %s2, 8
    %v303 = vld [vmem:[%s302] sm:$0xff]
    %v304 = vlaneseq
    %v305 = vshrl.u32 %v304, 7
    %v306 = vsub.s32 1, %v305
    %v307 = vrot.slane %v214, %v306
    %v308 = vsel %vm194, %v211, 0
    %v310 = vsel %vm194, %v213, 0
    %v313 = vsel %vm194, %v303, 0
    %315 = vmatprep.subr.mxu0 0.0
    %316 = vmatpush1.xpose.msra.mxu0 %v313
    %317 = vmatprep.subr.mxu0 0.0
    %318 = vmatpush1.xpose.msra.mxu0 0.0
    %319 = vmatprep.subr.mxu0 0.0
    %320 = vmatpush1.xpose.msra.mxu0 0.0
    %321 = vmatprep.subr.mxu0 0.0
    %322 = vmatpush1.xpose.msra.mxu0 0.0
    %323 = vmatprep.subr.mxu0 0.0
    %324 = vmatpush1.xpose.msra.mxu0 0.0
    %325 = vmatprep.subr.mxu0 0.0
    %326 = vmatpush1.xpose.msra.mxu0 0.0
    %327 = vmatprep.subr.mxu0 0.0
    %328 = vmatpush1.xpose.msra.mxu0 0.0
    %329 = vmatprep.subr.mxu0 0.0
    %330 = vmatpush1.xpose.msra.mxu0 0.0
    %331 = vmatprep.subr.mxu0 0.0
    %332 = vmatpush1.xpose.msra.mxu0 0.0
    %333 = vmatprep.subr.mxu0 0.0
    %334 = vmatpush1.xpose.msra.mxu0 0.0
    %335 = vmatprep.subr.mxu0 0.0
    %336 = vmatpush1.xpose.msra.mxu0 0.0
    %337 = vmatprep.subr.mxu0 0.0
    %338 = vmatpush1.xpose.msra.mxu0 0.0
    %339 = vmatprep.subr.mxu0 0.0
    %340 = vmatpush1.xpose.msra.mxu0 0.0
    %341 = vmatprep.subr.mxu0 0.0
    %342 = vmatpush1.xpose.msra.mxu0 0.0
    %343 = vmatprep.subr.mxu0 0.0
    %344 = vmatpush1.xpose.msra.mxu0 0.0
    %345 = vmatprep.subr.mxu0 0.0
    %346 = vmatpush1.xpose.msra.mxu0 0.0
    %347 = vmatprep.subr.mxu0 0.0
    %348 = vmatpush1.xpose.msra.mxu0 0.0
    %349 = vmatprep.subr.mxu0 0.0
    %350 = vmatpush1.xpose.msra.mxu0 0.0
    %351 = vmatprep.subr.mxu0 0.0
    %352 = vmatpush1.xpose.msra.mxu0 0.0
    %353 = vmatprep.subr.mxu0 0.0
    %354 = vmatpush1.xpose.msra.mxu0 0.0
    %355 = vmatprep.subr.mxu0 0.0
    %356 = vmatpush1.xpose.msra.mxu0 0.0
    %357 = vmatprep.subr.mxu0 0.0
    %358 = vmatpush1.xpose.msra.mxu0 0.0
    %359 = vmatprep.subr.mxu0 0.0
    %360 = vmatpush1.xpose.msra.mxu0 0.0
    %361 = vmatprep.subr.mxu0 0.0
    %362 = vmatpush1.xpose.msra.mxu0 0.0
    %363 = vmatprep.subr.mxu0 0.0
    %364 = vmatpush1.xpose.msra.mxu0 0.0
    %365 = vmatprep.subr.mxu0 0.0
    %366 = vmatpush1.xpose.msra.mxu0 0.0
    %367 = vmatprep.subr.mxu0 0.0
    %368 = vmatpush1.xpose.msra.mxu0 0.0
    %369 = vmatprep.subr.mxu0 0.0
    %370 = vmatpush1.xpose.msra.mxu0 0.0
    %371 = vmatprep.subr.mxu0 0.0
    %372 = vmatpush1.xpose.msra.mxu0 0.0
    %373 = vmatprep.subr.mxu0 0.0
    %374 = vmatpush1.xpose.msra.mxu0 0.0
    %375 = vmatprep.subr.mxu0 0.0
    %376 = vmatpush1.xpose.msra.mxu0 0.0
    %377 = vmatprep.subr.mxu0 0.0
    %378 = vmatpush1.xpose.msra.mxu0 0.0
    %379 = vmatprep.mubr.f32.mxu0 0.0
    %380 = vmatmul.mubr.f32.gmra.mrb[0].mxu0 %v308
    %v381 = vpop.f32.mrb[0].mxu0
    %v382 = vadd.f32 %v307, %v381
    %v383 = vpop.f32.mrb[0].mxu0
    %384 = vmatprep.mubr.f32.mxu0 0.0
    %385 = vmatmul.mubr.f32.gmra.mrb[0].mxu0 %v310
    %v386 = vpop.f32.mrb[0].mxu0
    %v387 = vadd.f32 %v307, %v386
    %v388 = vpop.f32.mrb[0].mxu0
    %389 = vdwg.mxu0
    %v390 = vlaneseq
    %v391 = vshrl.u32 %v390, 7
    %v392 = vlaneseq
    %v393 = vand.u32 %v392, 127
    %v394 = vadd.s32 %v391, 1
    %v395 = vadd.s32 %v391, 2
    %v396 = vadd.s32 %v391, 3
    %v397 = vadd.s32 %v391, 4
    %v398 = vadd.s32 %v391, 5
    %v399 = vadd.s32 %v391, 6
    %v400 = vadd.s32 %v391, 7
    %v401 = vsub.s32 %v391, %v393
    %v402 = vsub.s32 %v394, %v393
    %v403 = vsub.s32 %v395, %v393
    %v404 = vsub.s32 %v396, %v393
    %v405 = vsub.s32 %v397, %v393
    %v406 = vsub.s32 %v398, %v393
    %v407 = vsub.s32 %v399, %v393
    %v408 = vsub.s32 %v400, %v393
    %vm409 = vcmp.eq.s32.totalorder %v401, 7
    %vm410 = vcmp.eq.s32.totalorder %v402, 7
    %vm411 = vcmp.eq.s32.totalorder %v403, 7
    %vm412 = vcmp.eq.s32.totalorder %v404, 7
    %vm413 = vcmp.eq.s32.totalorder %v405, 7
    %vm414 = vcmp.eq.s32.totalorder %v406, 7
    %vm415 = vcmp.eq.s32.totalorder %v407, 7
    %vm416 = vcmp.eq.s32.totalorder %v408, 7
    %v417 = vsel %vm409, 1, 0
    %v418 = vsel %vm410, 1, 0
    %v419 = vsel %vm411, 1, 0
    %v420 = vsel %vm412, 1, 0
    %v421 = vsel %vm413, 1, 0
    %v422 = vsel %vm414, 1, 0
    %v423 = vsel %vm415, 1, 0
    %v424 = vsel %vm416, 1, 0
    %v425 = vcvt.s32.f32 %v417
    %v426 = vcvt.s32.f32 %v418
    %v427 = vcvt.s32.f32 %v419
    %v428 = vcvt.s32.f32 %v420
    %v429 = vcvt.s32.f32 %v421
    %v430 = vcvt.s32.f32 %v422
    %v431 = vcvt.s32.f32 %v423
    %v432 = vcvt.s32.f32 %v424
    %v433 = vlaneseq
    %v434 = vshrl.u32 %v433, 7
    %v435 = vsub.s32 0, %v434
    %v436 = vrot.slane %v294, %v435
    %438 = vbcast.lane.b32.xlu0 %v436, 256
    %v439 = vpop.permute.xlu0 %438
    %v440 = vlaneseq
    %v441 = vshrl.u32 %v440, 7
    %v442 = vsub.s32 1, %v441
    %v443 = vrot.slane %v294, %v442
    %445 = vbcast.lane.b32.xlu0 %v443, 256
    %v446 = vpop.permute.xlu0 %445
    %v447 = vlaneseq
    %v448 = vshrl.u32 %v447, 7
    %v449 = vsub.s32 2, %v448
    %v450 = vrot.slane %v294, %v449
    %452 = vbcast.lane.b32.xlu0 %v450, 256
    %v453 = vpop.permute.xlu0 %452
    %v454 = vlaneseq
    %v455 = vshrl.u32 %v454, 7
    %v456 = vsub.s32 3, %v455
    %v457 = vrot.slane %v294, %v456
    %459 = vbcast.lane.b32.xlu0 %v457, 256
    %v460 = vpop.permute.xlu0 %459
    %v461 = vlaneseq
    %v462 = vshrl.u32 %v461, 7
    %v463 = vsub.s32 4, %v462
    %v464 = vrot.slane %v294, %v463
    %466 = vbcast.lane.b32.xlu0 %v464, 256
    %v467 = vpop.permute.xlu0 %466
    %v468 = vlaneseq
    %v469 = vshrl.u32 %v468, 7
    %v470 = vsub.s32 5, %v469
    %v471 = vrot.slane %v294, %v470
    %473 = vbcast.lane.b32.xlu0 %v471, 256
    %v474 = vpop.permute.xlu0 %473
    %v475 = vlaneseq
    %v476 = vshrl.u32 %v475, 7
    %v477 = vsub.s32 6, %v476
    %v478 = vrot.slane %v294, %v477
    %480 = vbcast.lane.b32.xlu0 %v478, 256
    %v481 = vpop.permute.xlu0 %480
    %v482 = vlaneseq
    %v483 = vshrl.u32 %v482, 7
    %v484 = vsub.s32 7, %v483
    %v485 = vrot.slane %v294, %v484
    %487 = vbcast.lane.b32.xlu0 %v485, 256
    %v488 = vpop.permute.xlu0 %487
    %v489 = vlaneseq
    %v490 = vshrl.u32 %v489, 7
    %v491 = vsub.s32 0, %v490
    %v492 = vrot.slane %v299, %v491
    %494 = vbcast.lane.b32.xlu0 %v492, 256
    %v495 = vpop.permute.xlu0 %494
    %v496 = vlaneseq
    %v497 = vshrl.u32 %v496, 7
    %v498 = vsub.s32 1, %v497
    %v499 = vrot.slane %v299, %v498
    %501 = vbcast.lane.b32.xlu0 %v499, 256
    %v502 = vpop.permute.xlu0 %501
    %v503 = vlaneseq
    %v504 = vshrl.u32 %v503, 7
    %v505 = vsub.s32 2, %v504
    %v506 = vrot.slane %v299, %v505
    %508 = vbcast.lane.b32.xlu0 %v506, 256
    %v509 = vpop.permute.xlu0 %508
    %v510 = vlaneseq
    %v511 = vshrl.u32 %v510, 7
    %v512 = vsub.s32 3, %v511
    %v513 = vrot.slane %v299, %v512
    %515 = vbcast.lane.b32.xlu0 %v513, 256
    %v516 = vpop.permute.xlu0 %515
    %v517 = vlaneseq
    %v518 = vshrl.u32 %v517, 7
    %v519 = vsub.s32 4, %v518
    %v520 = vrot.slane %v299, %v519
    %522 = vbcast.lane.b32.xlu0 %v520, 256
    %v523 = vpop.permute.xlu0 %522
    %v524 = vlaneseq
    %v525 = vshrl.u32 %v524, 7
    %v526 = vsub.s32 5, %v525
    %v527 = vrot.slane %v299, %v526
    %529 = vbcast.lane.b32.xlu0 %v527, 256
    %v530 = vpop.permute.xlu0 %529
    %v531 = vlaneseq
    %v532 = vshrl.u32 %v531, 7
    %v533 = vsub.s32 6, %v532
    %v534 = vrot.slane %v299, %v533
    %536 = vbcast.lane.b32.xlu0 %v534, 256
    %v537 = vpop.permute.xlu0 %536
    %v538 = vlaneseq
    %v539 = vshrl.u32 %v538, 7
    %v540 = vsub.s32 7, %v539
    %v541 = vrot.slane %v299, %v540
    %543 = vbcast.lane.b32.xlu0 %v541, 256
    %v544 = vpop.permute.xlu0 %543
    %v545 = vlaneseq
    %v546 = vshrl.u32 %v545, 7
    %v547 = vsub.s32 0, %v546
    %v548 = vrot.slane %v382, %v547
    %550 = vbcast.lane.b32.xlu0 %v548, 256
    %v551 = vpop.permute.xlu0 %550
    %v552 = vlaneseq
    %v553 = vshrl.u32 %v552, 7
    %v554 = vsub.s32 1, %v553
    %v555 = vrot.slane %v382, %v554
    %557 = vbcast.lane.b32.xlu0 %v555, 256
    %v558 = vpop.permute.xlu0 %557
    %v559 = vlaneseq
    %v560 = vshrl.u32 %v559, 7
    %v561 = vsub.s32 2, %v560
    %v562 = vrot.slane %v382, %v561
    %564 = vbcast.lane.b32.xlu0 %v562, 256
    %v565 = vpop.permute.xlu0 %564
    %v566 = vlaneseq
    %v567 = vshrl.u32 %v566, 7
    %v568 = vsub.s32 3, %v567
    %v569 = vrot.slane %v382, %v568
    %571 = vbcast.lane.b32.xlu0 %v569, 256
    %v572 = vpop.permute.xlu0 %571
    %v573 = vlaneseq
    %v574 = vshrl.u32 %v573, 7
    %v575 = vsub.s32 4, %v574
    %v576 = vrot.slane %v382, %v575
    %578 = vbcast.lane.b32.xlu0 %v576, 256
    %v579 = vpop.permute.xlu0 %578
    %v580 = vlaneseq
    %v581 = vshrl.u32 %v580, 7
    %v582 = vsub.s32 5, %v581
    %v583 = vrot.slane %v382, %v582
    %585 = vbcast.lane.b32.xlu0 %v583, 256
    %v586 = vpop.permute.xlu0 %585
    %v587 = vlaneseq
    %v588 = vshrl.u32 %v587, 7
    %v589 = vsub.s32 6, %v588
    %v590 = vrot.slane %v382, %v589
    %592 = vbcast.lane.b32.xlu0 %v590, 256
    %v593 = vpop.permute.xlu0 %592
    %v594 = vlaneseq
    %v595 = vshrl.u32 %v594, 7
    %v596 = vsub.s32 7, %v595
    %v597 = vrot.slane %v382, %v596
    %599 = vbcast.lane.b32.xlu0 %v597, 256
    %v600 = vpop.permute.xlu0 %599
    %v601 = vlaneseq
    %v602 = vshrl.u32 %v601, 7
    %v603 = vsub.s32 0, %v602
    %v604 = vrot.slane %v387, %v603
    %606 = vbcast.lane.b32.xlu0 %v604, 256
    %v607 = vpop.permute.xlu0 %606
    %v608 = vlaneseq
    %v609 = vshrl.u32 %v608, 7
    %v610 = vsub.s32 1, %v609
    %v611 = vrot.slane %v387, %v610
    %613 = vbcast.lane.b32.xlu0 %v611, 256
    %v614 = vpop.permute.xlu0 %613
    %v615 = vlaneseq
    %v616 = vshrl.u32 %v615, 7
    %v617 = vsub.s32 2, %v616
    %v618 = vrot.slane %v387, %v617
    %620 = vbcast.lane.b32.xlu0 %v618, 256
    %v621 = vpop.permute.xlu0 %620
    %v622 = vlaneseq
    %v623 = vshrl.u32 %v622, 7
    %v624 = vsub.s32 3, %v623
    %v625 = vrot.slane %v387, %v624
    %627 = vbcast.lane.b32.xlu0 %v625, 256
    %v628 = vpop.permute.xlu0 %627
    %v629 = vlaneseq
    %v630 = vshrl.u32 %v629, 7
    %v631 = vsub.s32 4, %v630
    %v632 = vrot.slane %v387, %v631
    %634 = vbcast.lane.b32.xlu0 %v632, 256
    %v635 = vpop.permute.xlu0 %634
    %v636 = vlaneseq
    %v637 = vshrl.u32 %v636, 7
    %v638 = vsub.s32 5, %v637
    %v639 = vrot.slane %v387, %v638
    %641 = vbcast.lane.b32.xlu0 %v639, 256
    %v642 = vpop.permute.xlu0 %641
    %v643 = vlaneseq
    %v644 = vshrl.u32 %v643, 7
    %v645 = vsub.s32 6, %v644
    %v646 = vrot.slane %v387, %v645
    %648 = vbcast.lane.b32.xlu0 %v646, 256
    %v649 = vpop.permute.xlu0 %648
    %v650 = vlaneseq
    %v651 = vshrl.u32 %v650, 7
    %v652 = vsub.s32 7, %v651
    %v653 = vrot.slane %v387, %v652
    %655 = vbcast.lane.b32.xlu0 %v653, 256
    %v656 = vpop.permute.xlu0 %655
    %v657 = vmul.f32 %v439, %v425
    %v658 = vmul.f32 %v446, %v426
    %v659 = vmul.f32 %v453, %v427
    %v660 = vmul.f32 %v460, %v428
    %v661 = vmul.f32 %v467, %v429
    %v662 = vmul.f32 %v474, %v430
    %v663 = vmul.f32 %v481, %v431
    %v664 = vmul.f32 %v488, %v432
    %v665 = vmul.f32 %v495, %v425
    %v666 = vmul.f32 %v502, %v426
    %v667 = vmul.f32 %v509, %v427
    %v668 = vmul.f32 %v516, %v428
    %v669 = vmul.f32 %v523, %v429
    %v670 = vmul.f32 %v530, %v430
    %v671 = vmul.f32 %v537, %v431
    %v672 = vmul.f32 %v544, %v432
    %v673 = vmul.f32 %v551, %v425
    %v674 = vmul.f32 %v558, %v426
    %v675 = vmul.f32 %v565, %v427
    %v676 = vmul.f32 %v572, %v428
    %v677 = vmul.f32 %v579, %v429
    %v678 = vmul.f32 %v586, %v430
    %v679 = vmul.f32 %v593, %v431
    %v680 = vmul.f32 %v600, %v432
    %v681 = vmul.f32 %v607, %v425
    %v682 = vmul.f32 %v614, %v426
    %v683 = vmul.f32 %v621, %v427
    %v684 = vmul.f32 %v628, %v428
    %v685 = vmul.f32 %v635, %v429
    %v686 = vmul.f32 %v642, %v430
    %v687 = vmul.f32 %v649, %v431
    %v688 = vmul.f32 %v656, %v432
    %vm689 = vcmask 64512
    %v690 = vsel %vm689, %v657, 0.0
    %v691 = vrot.slane %v690, 4
    %v692 = vadd.f32 %v690, %v691
    %v693 = vrot.slane %v692, 2
    %v694 = vadd.f32 %v692, %v693
    %v695 = vrot.slane %v694, 1
    %v696 = vadd.f32 %v694, %v695
    %v697 = vsel %vm689, %v658, 0.0
    %v698 = vrot.slane %v697, 4
    %v699 = vadd.f32 %v697, %v698
    %v700 = vrot.slane %v699, 2
    %v701 = vadd.f32 %v699, %v700
    %v702 = vrot.slane %v701, 1
    %v703 = vadd.f32 %v701, %v702
    %v704 = vsel %vm689, %v659, 0.0
    %v705 = vrot.slane %v704, 4
    %v706 = vadd.f32 %v704, %v705
    %v707 = vrot.slane %v706, 2
    %v708 = vadd.f32 %v706, %v707
    %v709 = vrot.slane %v708, 1
    %v710 = vadd.f32 %v708, %v709
    %v711 = vsel %vm689, %v660, 0.0
    %v712 = vrot.slane %v711, 4
    %v713 = vadd.f32 %v711, %v712
    %v714 = vrot.slane %v713, 2
    %v715 = vadd.f32 %v713, %v714
    %v716 = vrot.slane %v715, 1
    %v717 = vadd.f32 %v715, %v716
    %v718 = vsel %vm689, %v661, 0.0
    %v719 = vrot.slane %v718, 4
    %v720 = vadd.f32 %v718, %v719
    %v721 = vrot.slane %v720, 2
    %v722 = vadd.f32 %v720, %v721
    %v723 = vrot.slane %v722, 1
    %v724 = vadd.f32 %v722, %v723
    %v725 = vsel %vm689, %v662, 0.0
    %v726 = vrot.slane %v725, 4
    %v727 = vadd.f32 %v725, %v726
    %v728 = vrot.slane %v727, 2
    %v729 = vadd.f32 %v727, %v728
    %v730 = vrot.slane %v729, 1
    %v731 = vadd.f32 %v729, %v730
    %v732 = vsel %vm689, %v663, 0.0
    %v733 = vrot.slane %v732, 4
    %v734 = vadd.f32 %v732, %v733
    %v735 = vrot.slane %v734, 2
    %v736 = vadd.f32 %v734, %v735
    %v737 = vrot.slane %v736, 1
    %v738 = vadd.f32 %v736, %v737
    %v739 = vsel %vm689, %v664, 0.0
    %v740 = vrot.slane %v739, 4
    %v741 = vadd.f32 %v739, %v740
    %v742 = vrot.slane %v741, 2
    %v743 = vadd.f32 %v741, %v742
    %v744 = vrot.slane %v743, 1
    %v745 = vadd.f32 %v743, %v744
    %v746 = vsel %vm689, %v665, 0.0
    %v747 = vrot.slane %v746, 4
    %v748 = vadd.f32 %v746, %v747
    %v749 = vrot.slane %v748, 2
    %v750 = vadd.f32 %v748, %v749
    %v751 = vrot.slane %v750, 1
    %v752 = vadd.f32 %v750, %v751
    %v753 = vsel %vm689, %v666, 0.0
    %v754 = vrot.slane %v753, 4
    %v755 = vadd.f32 %v753, %v754
    %v756 = vrot.slane %v755, 2
    %v757 = vadd.f32 %v755, %v756
    %v758 = vrot.slane %v757, 1
    %v759 = vadd.f32 %v757, %v758
    %v760 = vsel %vm689, %v667, 0.0
    %v761 = vrot.slane %v760, 4
    %v762 = vadd.f32 %v760, %v761
    %v763 = vrot.slane %v762, 2
    %v764 = vadd.f32 %v762, %v763
    %v765 = vrot.slane %v764, 1
    %v766 = vadd.f32 %v764, %v765
    %v767 = vsel %vm689, %v668, 0.0
    %v768 = vrot.slane %v767, 4
    %v769 = vadd.f32 %v767, %v768
    %v770 = vrot.slane %v769, 2
    %v771 = vadd.f32 %v769, %v770
    %v772 = vrot.slane %v771, 1
    %v773 = vadd.f32 %v771, %v772
    %v774 = vsel %vm689, %v669, 0.0
    %v775 = vrot.slane %v774, 4
    %v776 = vadd.f32 %v774, %v775
    %v777 = vrot.slane %v776, 2
    %v778 = vadd.f32 %v776, %v777
    %v779 = vrot.slane %v778, 1
    %v780 = vadd.f32 %v778, %v779
    %v781 = vsel %vm689, %v670, 0.0
    %v782 = vrot.slane %v781, 4
    %v783 = vadd.f32 %v781, %v782
    %v784 = vrot.slane %v783, 2
    %v785 = vadd.f32 %v783, %v784
    %v786 = vrot.slane %v785, 1
    %v787 = vadd.f32 %v785, %v786
    %v788 = vsel %vm689, %v671, 0.0
    %v789 = vrot.slane %v788, 4
    %v790 = vadd.f32 %v788, %v789
    %v791 = vrot.slane %v790, 2
    %v792 = vadd.f32 %v790, %v791
    %v793 = vrot.slane %v792, 1
    %v794 = vadd.f32 %v792, %v793
    %v795 = vsel %vm689, %v672, 0.0
    %v796 = vrot.slane %v795, 4
    %v797 = vadd.f32 %v795, %v796
    %v798 = vrot.slane %v797, 2
    %v799 = vadd.f32 %v797, %v798
    %v800 = vrot.slane %v799, 1
    %v801 = vadd.f32 %v799, %v800
    %v802 = vsel %vm689, %v673, 0.0
    %v803 = vrot.slane %v802, 4
    %v804 = vadd.f32 %v802, %v803
    %v805 = vrot.slane %v804, 2
    %v806 = vadd.f32 %v804, %v805
    %v807 = vrot.slane %v806, 1
    %v808 = vadd.f32 %v806, %v807
    %v809 = vsel %vm689, %v674, 0.0
    %v810 = vrot.slane %v809, 4
    %v811 = vadd.f32 %v809, %v810
    %v812 = vrot.slane %v811, 2
    %v813 = vadd.f32 %v811, %v812
    %v814 = vrot.slane %v813, 1
    %v815 = vadd.f32 %v813, %v814
    %v816 = vsel %vm689, %v675, 0.0
    %v817 = vrot.slane %v816, 4
    %v818 = vadd.f32 %v816, %v817
    %v819 = vrot.slane %v818, 2
    %v820 = vadd.f32 %v818, %v819
    %v821 = vrot.slane %v820, 1
    %v822 = vadd.f32 %v820, %v821
    %v823 = vsel %vm689, %v676, 0.0
    %v824 = vrot.slane %v823, 4
    %v825 = vadd.f32 %v823, %v824
    %v826 = vrot.slane %v825, 2
    %v827 = vadd.f32 %v825, %v826
    %v828 = vrot.slane %v827, 1
    %v829 = vadd.f32 %v827, %v828
    %v830 = vsel %vm689, %v677, 0.0
    %v831 = vrot.slane %v830, 4
    %v832 = vadd.f32 %v830, %v831
    %v833 = vrot.slane %v832, 2
    %v834 = vadd.f32 %v832, %v833
    %v835 = vrot.slane %v834, 1
    %v836 = vadd.f32 %v834, %v835
    %v837 = vsel %vm689, %v678, 0.0
    %v838 = vrot.slane %v837, 4
    %v839 = vadd.f32 %v837, %v838
    %v840 = vrot.slane %v839, 2
    %v841 = vadd.f32 %v839, %v840
    %v842 = vrot.slane %v841, 1
    %v843 = vadd.f32 %v841, %v842
    %v844 = vsel %vm689, %v679, 0.0
    %v845 = vrot.slane %v844, 4
    %v846 = vadd.f32 %v844, %v845
    %v847 = vrot.slane %v846, 2
    %v848 = vadd.f32 %v846, %v847
    %v849 = vrot.slane %v848, 1
    %v850 = vadd.f32 %v848, %v849
    %v851 = vsel %vm689, %v680, 0.0
    %v852 = vrot.slane %v851, 4
    %v853 = vadd.f32 %v851, %v852
    %v854 = vrot.slane %v853, 2
    %v855 = vadd.f32 %v853, %v854
    %v856 = vrot.slane %v855, 1
    %v857 = vadd.f32 %v855, %v856
    %v858 = vsel %vm689, %v681, 0.0
    %v859 = vrot.slane %v858, 4
    %v860 = vadd.f32 %v858, %v859
    %v861 = vrot.slane %v860, 2
    %v862 = vadd.f32 %v860, %v861
    %v863 = vrot.slane %v862, 1
    %v864 = vadd.f32 %v862, %v863
    %v865 = vsel %vm689, %v682, 0.0
    %v866 = vrot.slane %v865, 4
    %v867 = vadd.f32 %v865, %v866
    %v868 = vrot.slane %v867, 2
    %v869 = vadd.f32 %v867, %v868
    %v870 = vrot.slane %v869, 1
    %v871 = vadd.f32 %v869, %v870
    %v872 = vsel %vm689, %v683, 0.0
    %v873 = vrot.slane %v872, 4
    %v874 = vadd.f32 %v872, %v873
    %v875 = vrot.slane %v874, 2
    %v876 = vadd.f32 %v874, %v875
    %v877 = vrot.slane %v876, 1
    %v878 = vadd.f32 %v876, %v877
    %v879 = vsel %vm689, %v684, 0.0
    %v880 = vrot.slane %v879, 4
    %v881 = vadd.f32 %v879, %v880
    %v882 = vrot.slane %v881, 2
    %v883 = vadd.f32 %v881, %v882
    %v884 = vrot.slane %v883, 1
    %v885 = vadd.f32 %v883, %v884
    %v886 = vsel %vm689, %v685, 0.0
    %v887 = vrot.slane %v886, 4
    %v888 = vadd.f32 %v886, %v887
    %v889 = vrot.slane %v888, 2
    %v890 = vadd.f32 %v888, %v889
    %v891 = vrot.slane %v890, 1
    %v892 = vadd.f32 %v890, %v891
    %v893 = vsel %vm689, %v686, 0.0
    %v894 = vrot.slane %v893, 4
    %v895 = vadd.f32 %v893, %v894
    %v896 = vrot.slane %v895, 2
    %v897 = vadd.f32 %v895, %v896
    %v898 = vrot.slane %v897, 1
    %v899 = vadd.f32 %v897, %v898
    %v900 = vsel %vm689, %v687, 0.0
    %v901 = vrot.slane %v900, 4
    %v902 = vadd.f32 %v900, %v901
    %v903 = vrot.slane %v902, 2
    %v904 = vadd.f32 %v902, %v903
    %v905 = vrot.slane %v904, 1
    %v906 = vadd.f32 %v904, %v905
    %v907 = vsel %vm689, %v688, 0.0
    %v908 = vrot.slane %v907, 4
    %v909 = vadd.f32 %v907, %v908
    %v910 = vrot.slane %v909, 2
    %v911 = vadd.f32 %v909, %v910
    %v912 = vrot.slane %v911, 1
    %v913 = vadd.f32 %v911, %v912
    %v914 = vld [vmem:[%s5] sm:$0xff]
    %v915 = vmul.f32 %v914, -1e+30
    %916 = vrot.lane.b32.xlu0 %v180, 96
    %v917 = vpop.permute.xlu0 %916
    %v926 = vsel %vm68, %v703, %v696
    %v927 = vsel %vm71, %v710, %v926
    %v928 = vsel %vm74, %v717, %v927
    %v929 = vsel %vm77, %v724, %v928
    %v930 = vsel %vm80, %v731, %v929
    %v931 = vsel %vm83, %v738, %v930
    %v932 = vsel %vm86, %v745, %v931
    %v934 = vsel %vm194, %v200, 0
    %v936 = vsel %vm194, %v917, 0
    %938 = vmatprep.subr.mxu0 0.0
    %939 = vmatpush1.xpose.msra.mxu0 %v936
    %940 = vmatprep.subr.mxu0 0.0
    %941 = vmatpush1.xpose.msra.mxu0 0.0
    %942 = vmatprep.subr.mxu0 0.0
    %943 = vmatpush1.xpose.msra.mxu0 0.0
    %944 = vmatprep.subr.mxu0 0.0
    %945 = vmatpush1.xpose.msra.mxu0 0.0
    %946 = vmatprep.subr.mxu0 0.0
    %947 = vmatpush1.xpose.msra.mxu0 0.0
    %948 = vmatprep.subr.mxu0 0.0
    %949 = vmatpush1.xpose.msra.mxu0 0.0
    %950 = vmatprep.subr.mxu0 0.0
    %951 = vmatpush1.xpose.msra.mxu0 0.0
    %952 = vmatprep.subr.mxu0 0.0
    %953 = vmatpush1.xpose.msra.mxu0 0.0
    %954 = vmatprep.subr.mxu0 0.0
    %955 = vmatpush1.xpose.msra.mxu0 0.0
    %956 = vmatprep.subr.mxu0 0.0
    %957 = vmatpush1.xpose.msra.mxu0 0.0
    %958 = vmatprep.subr.mxu0 0.0
    %959 = vmatpush1.xpose.msra.mxu0 0.0
    %960 = vmatprep.subr.mxu0 0.0
    %961 = vmatpush1.xpose.msra.mxu0 0.0
    %962 = vmatprep.subr.mxu0 0.0
    %963 = vmatpush1.xpose.msra.mxu0 0.0
    %964 = vmatprep.subr.mxu0 0.0
    %965 = vmatpush1.xpose.msra.mxu0 0.0
    %966 = vmatprep.subr.mxu0 0.0
    %967 = vmatpush1.xpose.msra.mxu0 0.0
    %968 = vmatprep.subr.mxu0 0.0
    %969 = vmatpush1.xpose.msra.mxu0 0.0
    %970 = vmatprep.subr.mxu0 0.0
    %971 = vmatpush1.xpose.msra.mxu0 0.0
    %972 = vmatprep.subr.mxu0 0.0
    %973 = vmatpush1.xpose.msra.mxu0 0.0
    %974 = vmatprep.subr.mxu0 0.0
    %975 = vmatpush1.xpose.msra.mxu0 0.0
    %976 = vmatprep.subr.mxu0 0.0
    %977 = vmatpush1.xpose.msra.mxu0 0.0
    %978 = vmatprep.subr.mxu0 0.0
    %979 = vmatpush1.xpose.msra.mxu0 0.0
    %980 = vmatprep.subr.mxu0 0.0
    %981 = vmatpush1.xpose.msra.mxu0 0.0
    %982 = vmatprep.subr.mxu0 0.0
    %983 = vmatpush1.xpose.msra.mxu0 0.0
    %984 = vmatprep.subr.mxu0 0.0
    %985 = vmatpush1.xpose.msra.mxu0 0.0
    %986 = vmatprep.subr.mxu0 0.0
    %987 = vmatpush1.xpose.msra.mxu0 0.0
    %988 = vmatprep.subr.mxu0 0.0
    %989 = vmatpush1.xpose.msra.mxu0 0.0
    %990 = vmatprep.subr.mxu0 0.0
    %991 = vmatpush1.xpose.msra.mxu0 0.0
    %992 = vmatprep.subr.mxu0 0.0
    %993 = vmatpush1.xpose.msra.mxu0 0.0
    %994 = vmatprep.subr.mxu0 0.0
    %995 = vmatpush1.xpose.msra.mxu0 0.0
    %996 = vmatprep.subr.mxu0 0.0
    %997 = vmatpush1.xpose.msra.mxu0 0.0
    %998 = vmatprep.subr.mxu0 0.0
    %999 = vmatpush1.xpose.msra.mxu0 0.0
    %1000 = vmatprep.subr.mxu0 0.0
    %1001 = vmatpush1.xpose.msra.mxu0 0.0
    %1002 = vmatprep.mubr.f32.mxu0 0.0
    %1003 = vmatmul.mubr.f32.gmra.mrb[0].mxu0 %v934
    %v1004 = vpop.f32.mrb[0].mxu0
    %v1005 = vadd.f32 %v932, %v1004
    %v1006 = vpop.f32.mrb[0].mxu0
    %1007 = vdwg.mxu0
    %1008 = vrot.lane.b32.xlu0 %v185, 96
    %v1009 = vpop.permute.xlu0 %1008
    %v1018 = vsel %vm68, %v759, %v752
    %v1019 = vsel %vm71, %v766, %v1018
    %v1020 = vsel %vm74, %v773, %v1019
    %v1021 = vsel %vm77, %v780, %v1020
    %v1022 = vsel %vm80, %v787, %v1021
    %v1023 = vsel %vm83, %v794, %v1022
    %v1024 = vsel %vm86, %v801, %v1023
    %v1026 = vsel %vm194, %v201, 0
    %v1028 = vsel %vm194, %v1009, 0
    %1030 = vmatprep.subr.mxu0 0.0
    %1031 = vmatpush1.xpose.msra.mxu0 %v1028
    %1032 = vmatprep.subr.mxu0 0.0
    %1033 = vmatpush1.xpose.msra.mxu0 0.0
    %1034 = vmatprep.subr.mxu0 0.0
    %1035 = vmatpush1.xpose.msra.mxu0 0.0
    %1036 = vmatprep.subr.mxu0 0.0
    %1037 = vmatpush1.xpose.msra.mxu0 0.0
    %1038 = vmatprep.subr.mxu0 0.0
    %1039 = vmatpush1.xpose.msra.mxu0 0.0
    %1040 = vmatprep.subr.mxu0 0.0
    %1041 = vmatpush1.xpose.msra.mxu0 0.0
    %1042 = vmatprep.subr.mxu0 0.0
    %1043 = vmatpush1.xpose.msra.mxu0 0.0
    %1044 = vmatprep.subr.mxu0 0.0
    %1045 = vmatpush1.xpose.msra.mxu0 0.0
    %1046 = vmatprep.subr.mxu0 0.0
    %1047 = vmatpush1.xpose.msra.mxu0 0.0
    %1048 = vmatprep.subr.mxu0 0.0
    %1049 = vmatpush1.xpose.msra.mxu0 0.0
    %1050 = vmatprep.subr.mxu0 0.0
    %1051 = vmatpush1.xpose.msra.mxu0 0.0
    %1052 = vmatprep.subr.mxu0 0.0
    %1053 = vmatpush1.xpose.msra.mxu0 0.0
    %1054 = vmatprep.subr.mxu0 0.0
    %1055 = vmatpush1.xpose.msra.mxu0 0.0
    %1056 = vmatprep.subr.mxu0 0.0
    %1057 = vmatpush1.xpose.msra.mxu0 0.0
    %1058 = vmatprep.subr.mxu0 0.0
    %1059 = vmatpush1.xpose.msra.mxu0 0.0
    %1060 = vmatprep.subr.mxu0 0.0
    %1061 = vmatpush1.xpose.msra.mxu0 0.0
    %1062 = vmatprep.subr.mxu0 0.0
    %1063 = vmatpush1.xpose.msra.mxu0 0.0
    %1064 = vmatprep.subr.mxu0 0.0
    %1065 = vmatpush1.xpose.msra.mxu0 0.0
    %1066 = vmatprep.subr.mxu0 0.0
    %1067 = vmatpush1.xpose.msra.mxu0 0.0
    %1068 = vmatprep.subr.mxu0 0.0
    %1069 = vmatpush1.xpose.msra.mxu0 0.0
    %1070 = vmatprep.subr.mxu0 0.0
    %1071 = vmatpush1.xpose.msra.mxu0 0.0
    %1072 = vmatprep.subr.mxu0 0.0
    %1073 = vmatpush1.xpose.msra.mxu0 0.0
    %1074 = vmatprep.subr.mxu0 0.0
    %1075 = vmatpush1.xpose.msra.mxu0 0.0
    %1076 = vmatprep.subr.mxu0 0.0
    %1077 = vmatpush1.xpose.msra.mxu0 0.0
    %1078 = vmatprep.subr.mxu0 0.0
    %1079 = vmatpush1.xpose.msra.mxu0 0.0
    %1080 = vmatprep.subr.mxu0 0.0
    %1081 = vmatpush1.xpose.msra.mxu0 0.0
    %1082 = vmatprep.subr.mxu0 0.0
    %1083 = vmatpush1.xpose.msra.mxu0 0.0
    %1084 = vmatprep.subr.mxu0 0.0
    %1085 = vmatpush1.xpose.msra.mxu0 0.0
    %1086 = vmatprep.subr.mxu0 0.0
    %1087 = vmatpush1.xpose.msra.mxu0 0.0
    %1088 = vmatprep.subr.mxu0 0.0
    %1089 = vmatpush1.xpose.msra.mxu0 0.0
    %1090 = vmatprep.subr.mxu0 0.0
    %1091 = vmatpush1.xpose.msra.mxu0 0.0
    %1092 = vmatprep.subr.mxu0 0.0
    %1093 = vmatpush1.xpose.msra.mxu0 0.0
    %1094 = vmatprep.mubr.f32.mxu0 0.0
    %1095 = vmatmul.mubr.f32.gmra.mrb[0].mxu0 %v1026
    %v1096 = vpop.f32.mrb[0].mxu0
    %v1097 = vadd.f32 %v1024, %v1096
    %v1098 = vpop.f32.mrb[0].mxu0
    %1099 = vdwg.mxu0
    %1100 = vrot.lane.b32.xlu0 %v211, 96
    %v1101 = vpop.permute.xlu0 %1100
    %v1110 = vsel %vm68, %v815, %v808
    %v1111 = vsel %vm71, %v822, %v1110
    %v1112 = vsel %vm74, %v829, %v1111
    %v1113 = vsel %vm77, %v836, %v1112
    %v1114 = vsel %vm80, %v843, %v1113
    %v1115 = vsel %vm83, %v850, %v1114
    %v1116 = vsel %vm86, %v857, %v1115
    %v1118 = vsel %vm194, %v205, 0
    %v1120 = vsel %vm194, %v1101, 0
    %1122 = vmatprep.subr.mxu0 0.0
    %1123 = vmatpush1.xpose.msra.mxu0 %v1120
    %1124 = vmatprep.subr.mxu0 0.0
    %1125 = vmatpush1.xpose.msra.mxu0 0.0
    %1126 = vmatprep.subr.mxu0 0.0
    %1127 = vmatpush1.xpose.msra.mxu0 0.0
    %1128 = vmatprep.subr.mxu0 0.0
    %1129 = vmatpush1.xpose.msra.mxu0 0.0
    %1130 = vmatprep.subr.mxu0 0.0
    %1131 = vmatpush1.xpose.msra.mxu0 0.0
    %1132 = vmatprep.subr.mxu0 0.0
    %1133 = vmatpush1.xpose.msra.mxu0 0.0
    %1134 = vmatprep.subr.mxu0 0.0
    %1135 = vmatpush1.xpose.msra.mxu0 0.0
    %1136 = vmatprep.subr.mxu0 0.0
    %1137 = vmatpush1.xpose.msra.mxu0 0.0
    %1138 = vmatprep.subr.mxu0 0.0
    %1139 = vmatpush1.xpose.msra.mxu0 0.0
    %1140 = vmatprep.subr.mxu0 0.0
    %1141 = vmatpush1.xpose.msra.mxu0 0.0
    %1142 = vmatprep.subr.mxu0 0.0
    %1143 = vmatpush1.xpose.msra.mxu0 0.0
    %1144 = vmatprep.subr.mxu0 0.0
    %1145 = vmatpush1.xpose.msra.mxu0 0.0
    %1146 = vmatprep.subr.mxu0 0.0
    %1147 = vmatpush1.xpose.msra.mxu0 0.0
    %1148 = vmatprep.subr.mxu0 0.0
    %1149 = vmatpush1.xpose.msra.mxu0 0.0
    %1150 = vmatprep.subr.mxu0 0.0
    %1151 = vmatpush1.xpose.msra.mxu0 0.0
    %1152 = vmatprep.subr.mxu0 0.0
    %1153 = vmatpush1.xpose.msra.mxu0 0.0
    %1154 = vmatprep.subr.mxu0 0.0
    %1155 = vmatpush1.xpose.msra.mxu0 0.0
    %1156 = vmatprep.subr.mxu0 0.0
    %1157 = vmatpush1.xpose.msra.mxu0 0.0
    %1158 = vmatprep.subr.mxu0 0.0
    %1159 = vmatpush1.xpose.msra.mxu0 0.0
    %1160 = vmatprep.subr.mxu0 0.0
    %1161 = vmatpush1.xpose.msra.mxu0 0.0
    %1162 = vmatprep.subr.mxu0 0.0
    %1163 = vmatpush1.xpose.msra.mxu0 0.0
    %1164 = vmatprep.subr.mxu0 0.0
    %1165 = vmatpush1.xpose.msra.mxu0 0.0
    %1166 = vmatprep.subr.mxu0 0.0
    %1167 = vmatpush1.xpose.msra.mxu0 0.0
    %1168 = vmatprep.subr.mxu0 0.0
    %1169 = vmatpush1.xpose.msra.mxu0 0.0
    %1170 = vmatprep.subr.mxu0 0.0
    %1171 = vmatpush1.xpose.msra.mxu0 0.0
    %1172 = vmatprep.subr.mxu0 0.0
    %1173 = vmatpush1.xpose.msra.mxu0 0.0
    %1174 = vmatprep.subr.mxu0 0.0
    %1175 = vmatpush1.xpose.msra.mxu0 0.0
    %1176 = vmatprep.subr.mxu0 0.0
    %1177 = vmatpush1.xpose.msra.mxu0 0.0
    %1178 = vmatprep.subr.mxu0 0.0
    %1179 = vmatpush1.xpose.msra.mxu0 0.0
    %1180 = vmatprep.subr.mxu0 0.0
    %1181 = vmatpush1.xpose.msra.mxu0 0.0
    %1182 = vmatprep.subr.mxu0 0.0
    %1183 = vmatpush1.xpose.msra.mxu0 0.0
    %1184 = vmatprep.subr.mxu0 0.0
    %1185 = vmatpush1.xpose.msra.mxu0 0.0
    %1186 = vmatprep.mubr.f32.mxu0 0.0
    %1187 = vmatmul.mubr.f32.gmra.mrb[0].mxu0 %v1118
    %v1188 = vpop.f32.mrb[0].mxu0
    %v1189 = vadd.f32 %v1116, %v1188
    %v1190 = vpop.f32.mrb[0].mxu0
    %1191 = vdwg.mxu0
    %1192 = vrot.lane.b32.xlu0 %v213, 96
    %v1193 = vpop.permute.xlu0 %1192
    %v1202 = vsel %vm68, %v871, %v864
    %v1203 = vsel %vm71, %v878, %v1202
    %v1204 = vsel %vm74, %v885, %v1203
    %v1205 = vsel %vm77, %v892, %v1204
    %v1206 = vsel %vm80, %v899, %v1205
    %v1207 = vsel %vm83, %v906, %v1206
    %v1208 = vsel %vm86, %v913, %v1207
    %v1210 = vsel %vm194, %v207, 0
    %v1212 = vsel %vm194, %v1193, 0
    %1214 = vmatprep.subr.mxu0 0.0
    %1215 = vmatpush1.xpose.msra.mxu0 %v1212
    %1216 = vmatprep.subr.mxu0 0.0
    %1217 = vmatpush1.xpose.msra.mxu0 0.0
    %1218 = vmatprep.subr.mxu0 0.0
    %1219 = vmatpush1.xpose.msra.mxu0 0.0
    %1220 = vmatprep.subr.mxu0 0.0
    %1221 = vmatpush1.xpose.msra.mxu0 0.0
    %1222 = vmatprep.subr.mxu0 0.0
    %1223 = vmatpush1.xpose.msra.mxu0 0.0
    %1224 = vmatprep.subr.mxu0 0.0
    %1225 = vmatpush1.xpose.msra.mxu0 0.0
    %1226 = vmatprep.subr.mxu0 0.0
    %1227 = vmatpush1.xpose.msra.mxu0 0.0
    %1228 = vmatprep.subr.mxu0 0.0
    %1229 = vmatpush1.xpose.msra.mxu0 0.0
    %1230 = vmatprep.subr.mxu0 0.0
    %1231 = vmatpush1.xpose.msra.mxu0 0.0
    %1232 = vmatprep.subr.mxu0 0.0
    %1233 = vmatpush1.xpose.msra.mxu0 0.0
    %1234 = vmatprep.subr.mxu0 0.0
    %1235 = vmatpush1.xpose.msra.mxu0 0.0
    %1236 = vmatprep.subr.mxu0 0.0
    %1237 = vmatpush1.xpose.msra.mxu0 0.0
    %1238 = vmatprep.subr.mxu0 0.0
    %1239 = vmatpush1.xpose.msra.mxu0 0.0
    %1240 = vmatprep.subr.mxu0 0.0
    %1241 = vmatpush1.xpose.msra.mxu0 0.0
    %1242 = vmatprep.subr.mxu0 0.0
    %1243 = vmatpush1.xpose.msra.mxu0 0.0
    %1244 = vmatprep.subr.mxu0 0.0
    %1245 = vmatpush1.xpose.msra.mxu0 0.0
    %1246 = vmatprep.subr.mxu0 0.0
    %1247 = vmatpush1.xpose.msra.mxu0 0.0
    %1248 = vmatprep.subr.mxu0 0.0
    %1249 = vmatpush1.xpose.msra.mxu0 0.0
    %1250 = vmatprep.subr.mxu0 0.0
    %1251 = vmatpush1.xpose.msra.mxu0 0.0
    %1252 = vmatprep.subr.mxu0 0.0
    %1253 = vmatpush1.xpose.msra.mxu0 0.0
    %1254 = vmatprep.subr.mxu0 0.0
    %1255 = vmatpush1.xpose.msra.mxu0 0.0
    %1256 = vmatprep.subr.mxu0 0.0
    %1257 = vmatpush1.xpose.msra.mxu0 0.0
    %1258 = vmatprep.subr.mxu0 0.0
    %1259 = vmatpush1.xpose.msra.mxu0 0.0
    %1260 = vmatprep.subr.mxu0 0.0
    %1261 = vmatpush1.xpose.msra.mxu0 0.0
    %1262 = vmatprep.subr.mxu0 0.0
    %1263 = vmatpush1.xpose.msra.mxu0 0.0
    %1264 = vmatprep.subr.mxu0 0.0
    %1265 = vmatpush1.xpose.msra.mxu0 0.0
    %1266 = vmatprep.subr.mxu0 0.0
    %1267 = vmatpush1.xpose.msra.mxu0 0.0
    %1268 = vmatprep.subr.mxu0 0.0
    %1269 = vmatpush1.xpose.msra.mxu0 0.0
    %1270 = vmatprep.subr.mxu0 0.0
    %1271 = vmatpush1.xpose.msra.mxu0 0.0
    %1272 = vmatprep.subr.mxu0 0.0
    %1273 = vmatpush1.xpose.msra.mxu0 0.0
    %1274 = vmatprep.subr.mxu0 0.0
    %1275 = vmatpush1.xpose.msra.mxu0 0.0
    %1276 = vmatprep.subr.mxu0 0.0
    %1277 = vmatpush1.xpose.msra.mxu0 0.0
    %1278 = vmatprep.mubr.f32.mxu0 0.0
    %1279 = vmatmul.mubr.f32.gmra.mrb[0].mxu0 %v1210
    %v1280 = vpop.f32.mrb[0].mxu0
    %v1281 = vadd.f32 %v1208, %v1280
    %v1282 = vpop.f32.mrb[0].mxu0
    %1283 = vdwg.mxu0
    %v1284 = vmul.f32 %v1005, 0.25
    %v1285 = vmul.f32 %v1097, 0.25
    %v1286 = vmul.f32 %v1189, 0.25
    %v1287 = vmul.f32 %v1281, 0.25
    %v1288 = vadd.f32 %v1284, %v915
    %v1289 = vadd.f32 %v1285, %v915
    %v1290 = vadd.f32 %v1286, %v915
    %v1291 = vadd.f32 %v1287, %v915
    %v1292 = vsel %vm689, %v1288, -inf
    %1293 = vmax.xlane.f32.xlu0 %v1292
    %v1294 = vpop.xlane.xlu0 %1293
    %v1295 = vsel %vm689, %v1289, -inf
    %1296 = vmax.xlane.f32.xlu0 %v1295
    %v1297 = vpop.xlane.xlu0 %1296
    %v1298 = vsel %vm689, %v1290, -inf
    %1299 = vmax.xlane.f32.xlu0 %v1298
    %v1300 = vpop.xlane.xlu0 %1299
    %v1301 = vsel %vm689, %v1291, -inf
    %1302 = vmax.xlane.f32.xlu0 %v1301
    %v1303 = vpop.xlane.xlu0 %1302
    %v1304 = vsub.f32 %v1288, %v1294
    %v1305 = vsub.f32 %v1289, %v1297
    %v1306 = vsub.f32 %v1290, %v1300
    %v1307 = vsub.f32 %v1291, %v1303
    %v1308 = vmul.f32 %v1304, 1.442695
    %v1309 = vpow.pop %v1308
    %v1310 = vmul.f32 %v1305, 1.442695
    %v1311 = vpow.pop %v1310
    %v1312 = vmul.f32 %v1306, 1.442695
    %v1313 = vpow.pop %v1312
    %v1314 = vmul.f32 %v1307, 1.442695
    %v1315 = vpow.pop %v1314
    %v1316 = vsel %vm689, %v1309, 0.0
    %1317 = vadd.xlane.f32.xlu0 %v1316
    %v1318 = vpop.xlane.xlu0 %1317
    %v1319 = vsel %vm689, %v1311, 0.0
    %1320 = vadd.xlane.f32.xlu0 %v1319
    %v1321 = vpop.xlane.xlu0 %1320
    %v1322 = vsel %vm689, %v1313, 0.0
    %1323 = vadd.xlane.f32.xlu0 %v1322
    %v1324 = vpop.xlane.xlu0 %1323
    %v1325 = vsel %vm689, %v1315, 0.0
    %1326 = vadd.xlane.f32.xlu0 %v1325
    %v1327 = vpop.xlane.xlu0 %1326
    %v1328 = vrcp.pop %v1318
    %v1329 = vrcp.pop %v1321
    %v1330 = vrcp.pop %v1324
    %v1331 = vrcp.pop %v1327
    %v1332 = vmul.f32 %v1309, %v1328
    %v1333 = vmul.f32 %v1311, %v1329
    %v1334 = vmul.f32 %v1313, %v1330
    %v1335 = vmul.f32 %v1315, %v1331
    %1336 = vrot.lane.b32.xlu0 %v180, 64
    %v1337 = vpop.permute.xlu0 %1336
    %v1340 = vsel %vm689, %v1332, 0
    %1342 = vmatprep.subr.mxu0 0.0
    %1343 = vmatpush1.msra.mxu0 %v1337
    %1344 = vmatprep.subr.mxu0 0.0
    %1345 = vmatpush1.msra.mxu0 0.0
    %1346 = vmatprep.subr.mxu0 0.0
    %1347 = vmatpush1.msra.mxu0 0.0
    %1348 = vmatprep.subr.mxu0 0.0
    %1349 = vmatpush1.msra.mxu0 0.0
    %1350 = vmatprep.subr.mxu0 0.0
    %1351 = vmatpush1.msra.mxu0 0.0
    %1352 = vmatprep.subr.mxu0 0.0
    %1353 = vmatpush1.msra.mxu0 0.0
    %1354 = vmatprep.subr.mxu0 0.0
    %1355 = vmatpush1.msra.mxu0 0.0
    %1356 = vmatprep.subr.mxu0 0.0
    %1357 = vmatpush1.msra.mxu0 0.0
    %1358 = vmatprep.subr.mxu0 0.0
    %1359 = vmatpush1.msra.mxu0 0.0
    %1360 = vmatprep.subr.mxu0 0.0
    %1361 = vmatpush1.msra.mxu0 0.0
    %1362 = vmatprep.subr.mxu0 0.0
    %1363 = vmatpush1.msra.mxu0 0.0
    %1364 = vmatprep.subr.mxu0 0.0
    %1365 = vmatpush1.msra.mxu0 0.0
    %1366 = vmatprep.subr.mxu0 0.0
    %1367 = vmatpush1.msra.mxu0 0.0
    %1368 = vmatprep.subr.mxu0 0.0
    %1369 = vmatpush1.msra.mxu0 0.0
    %1370 = vmatprep.subr.mxu0 0.0
    %1371 = vmatpush1.msra.mxu0 0.0
    %1372 = vmatprep.subr.mxu0 0.0
    %1373 = vmatpush1.msra.mxu0 0.0
    %1374 = vmatprep.subr.mxu0 0.0
    %1375 = vmatpush1.msra.mxu0 0.0
    %1376 = vmatprep.subr.mxu0 0.0
    %1377 = vmatpush1.msra.mxu0 0.0
    %1378 = vmatprep.subr.mxu0 0.0
    %1379 = vmatpush1.msra.mxu0 0.0
    %1380 = vmatprep.subr.mxu0 0.0
    %1381 = vmatpush1.msra.mxu0 0.0
    %1382 = vmatprep.subr.mxu0 0.0
    %1383 = vmatpush1.msra.mxu0 0.0
    %1384 = vmatprep.subr.mxu0 0.0
    %1385 = vmatpush1.msra.mxu0 0.0
    %1386 = vmatprep.subr.mxu0 0.0
    %1387 = vmatpush1.msra.mxu0 0.0
    %1388 = vmatprep.subr.mxu0 0.0
    %1389 = vmatpush1.msra.mxu0 0.0
    %1390 = vmatprep.subr.mxu0 0.0
    %1391 = vmatpush1.msra.mxu0 0.0
    %1392 = vmatprep.subr.mxu0 0.0
    %1393 = vmatpush1.msra.mxu0 0.0
    %1394 = vmatprep.subr.mxu0 0.0
    %1395 = vmatpush1.msra.mxu0 0.0
    %1396 = vmatprep.subr.mxu0 0.0
    %1397 = vmatpush1.msra.mxu0 0.0
    %1398 = vmatprep.subr.mxu0 0.0
    %1399 = vmatpush1.msra.mxu0 0.0
    %1400 = vmatprep.subr.mxu0 0.0
    %1401 = vmatpush1.msra.mxu0 0.0
    %1402 = vmatprep.subr.mxu0 0.0
    %1403 = vmatpush1.msra.mxu0 0.0
    %1404 = vmatprep.subr.mxu0 0.0
    %1405 = vmatpush1.msra.mxu0 0.0
    %1406 = vmatprep.mubr.f32.mxu0 0.0
    %1407 = vmatmul.mubr.f32.gmra.mrb[0].mxu0 %v1340
    %v1408 = vpop.f32.mrb[0].mxu0
    %v1409 = vadd.f32 0.0, %v1408
    %v1410 = vpop.f32.mrb[0].mxu0
    %1411 = vdwg.mxu0
    %1412 = vrot.lane.b32.xlu0 %v185, 64
    %v1413 = vpop.permute.xlu0 %1412
    %v1416 = vsel %vm689, %v1333, 0
    %1418 = vmatprep.subr.mxu0 0.0
    %1419 = vmatpush1.msra.mxu0 %v1413
    %1420 = vmatprep.subr.mxu0 0.0
    %1421 = vmatpush1.msra.mxu0 0.0
    %1422 = vmatprep.subr.mxu0 0.0
    %1423 = vmatpush1.msra.mxu0 0.0
    %1424 = vmatprep.subr.mxu0 0.0
    %1425 = vmatpush1.msra.mxu0 0.0
    %1426 = vmatprep.subr.mxu0 0.0
    %1427 = vmatpush1.msra.mxu0 0.0
    %1428 = vmatprep.subr.mxu0 0.0
    %1429 = vmatpush1.msra.mxu0 0.0
    %1430 = vmatprep.subr.mxu0 0.0
    %1431 = vmatpush1.msra.mxu0 0.0
    %1432 = vmatprep.subr.mxu0 0.0
    %1433 = vmatpush1.msra.mxu0 0.0
    %1434 = vmatprep.subr.mxu0 0.0
    %1435 = vmatpush1.msra.mxu0 0.0
    %1436 = vmatprep.subr.mxu0 0.0
    %1437 = vmatpush1.msra.mxu0 0.0
    %1438 = vmatprep.subr.mxu0 0.0
    %1439 = vmatpush1.msra.mxu0 0.0
    %1440 = vmatprep.subr.mxu0 0.0
    %1441 = vmatpush1.msra.mxu0 0.0
    %1442 = vmatprep.subr.mxu0 0.0
    %1443 = vmatpush1.msra.mxu0 0.0
    %1444 = vmatprep.subr.mxu0 0.0
    %1445 = vmatpush1.msra.mxu0 0.0
    %1446 = vmatprep.subr.mxu0 0.0
    %1447 = vmatpush1.msra.mxu0 0.0
    %1448 = vmatprep.subr.mxu0 0.0
    %1449 = vmatpush1.msra.mxu0 0.0
    %1450 = vmatprep.subr.mxu0 0.0
    %1451 = vmatpush1.msra.mxu0 0.0
    %1452 = vmatprep.subr.mxu0 0.0
    %1453 = vmatpush1.msra.mxu0 0.0
    %1454 = vmatprep.subr.mxu0 0.0
    %1455 = vmatpush1.msra.mxu0 0.0
    %1456 = vmatprep.subr.mxu0 0.0
    %1457 = vmatpush1.msra.mxu0 0.0
    %1458 = vmatprep.subr.mxu0 0.0
    %1459 = vmatpush1.msra.mxu0 0.0
    %1460 = vmatprep.subr.mxu0 0.0
    %1461 = vmatpush1.msra.mxu0 0.0
    %1462 = vmatprep.subr.mxu0 0.0
    %1463 = vmatpush1.msra.mxu0 0.0
    %1464 = vmatprep.subr.mxu0 0.0
    %1465 = vmatpush1.msra.mxu0 0.0
    %1466 = vmatprep.subr.mxu0 0.0
    %1467 = vmatpush1.msra.mxu0 0.0
    %1468 = vmatprep.subr.mxu0 0.0
    %1469 = vmatpush1.msra.mxu0 0.0
    %1470 = vmatprep.subr.mxu0 0.0
    %1471 = vmatpush1.msra.mxu0 0.0
    %1472 = vmatprep.subr.mxu0 0.0
    %1473 = vmatpush1.msra.mxu0 0.0
    %1474 = vmatprep.subr.mxu0 0.0
    %1475 = vmatpush1.msra.mxu0 0.0
    %1476 = vmatprep.subr.mxu0 0.0
    %1477 = vmatpush1.msra.mxu0 0.0
    %1478 = vmatprep.subr.mxu0 0.0
    %1479 = vmatpush1.msra.mxu0 0.0
    %1480 = vmatprep.subr.mxu0 0.0
    %1481 = vmatpush1.msra.mxu0 0.0
    %1482 = vmatprep.mubr.f32.mxu0 0.0
    %1483 = vmatmul.mubr.f32.gmra.mrb[0].mxu0 %v1416
    %v1484 = vpop.f32.mrb[0].mxu0
    %v1485 = vadd.f32 0.0, %v1484
    %v1486 = vpop.f32.mrb[0].mxu0
    %1487 = vdwg.mxu0
    %1488 = vrot.lane.b32.xlu0 %v211, 64
    %v1489 = vpop.permute.xlu0 %1488
    %v1492 = vsel %vm689, %v1334, 0
    %1494 = vmatprep.subr.mxu0 0.0
    %1495 = vmatpush1.msra.mxu0 %v1489
    %1496 = vmatprep.subr.mxu0 0.0
    %1497 = vmatpush1.msra.mxu0 0.0
    %1498 = vmatprep.subr.mxu0 0.0
    %1499 = vmatpush1.msra.mxu0 0.0
    %1500 = vmatprep.subr.mxu0 0.0
    %1501 = vmatpush1.msra.mxu0 0.0
    %1502 = vmatprep.subr.mxu0 0.0
    %1503 = vmatpush1.msra.mxu0 0.0
    %1504 = vmatprep.subr.mxu0 0.0
    %1505 = vmatpush1.msra.mxu0 0.0
    %1506 = vmatprep.subr.mxu0 0.0
    %1507 = vmatpush1.msra.mxu0 0.0
    %1508 = vmatprep.subr.mxu0 0.0
    %1509 = vmatpush1.msra.mxu0 0.0
    %1510 = vmatprep.subr.mxu0 0.0
    %1511 = vmatpush1.msra.mxu0 0.0
    %1512 = vmatprep.subr.mxu0 0.0
    %1513 = vmatpush1.msra.mxu0 0.0
    %1514 = vmatprep.subr.mxu0 0.0
    %1515 = vmatpush1.msra.mxu0 0.0
    %1516 = vmatprep.subr.mxu0 0.0
    %1517 = vmatpush1.msra.mxu0 0.0
    %1518 = vmatprep.subr.mxu0 0.0
    %1519 = vmatpush1.msra.mxu0 0.0
    %1520 = vmatprep.subr.mxu0 0.0
    %1521 = vmatpush1.msra.mxu0 0.0
    %1522 = vmatprep.subr.mxu0 0.0
    %1523 = vmatpush1.msra.mxu0 0.0
    %1524 = vmatprep.subr.mxu0 0.0
    %1525 = vmatpush1.msra.mxu0 0.0
    %1526 = vmatprep.subr.mxu0 0.0
    %1527 = vmatpush1.msra.mxu0 0.0
    %1528 = vmatprep.subr.mxu0 0.0
    %1529 = vmatpush1.msra.mxu0 0.0
    %1530 = vmatprep.subr.mxu0 0.0
    %1531 = vmatpush1.msra.mxu0 0.0
    %1532 = vmatprep.subr.mxu0 0.0
    %1533 = vmatpush1.msra.mxu0 0.0
    %1534 = vmatprep.subr.mxu0 0.0
    %1535 = vmatpush1.msra.mxu0 0.0
    %1536 = vmatprep.subr.mxu0 0.0
    %1537 = vmatpush1.msra.mxu0 0.0
    %1538 = vmatprep.subr.mxu0 0.0
    %1539 = vmatpush1.msra.mxu0 0.0
    %1540 = vmatprep.subr.mxu0 0.0
    %1541 = vmatpush1.msra.mxu0 0.0
    %1542 = vmatprep.subr.mxu0 0.0
    %1543 = vmatpush1.msra.mxu0 0.0
    %1544 = vmatprep.subr.mxu0 0.0
    %1545 = vmatpush1.msra.mxu0 0.0
    %1546 = vmatprep.subr.mxu0 0.0
    %1547 = vmatpush1.msra.mxu0 0.0
    %1548 = vmatprep.subr.mxu0 0.0
    %1549 = vmatpush1.msra.mxu0 0.0
    %1550 = vmatprep.subr.mxu0 0.0
    %1551 = vmatpush1.msra.mxu0 0.0
    %1552 = vmatprep.subr.mxu0 0.0
    %1553 = vmatpush1.msra.mxu0 0.0
    %1554 = vmatprep.subr.mxu0 0.0
    %1555 = vmatpush1.msra.mxu0 0.0
    %1556 = vmatprep.subr.mxu0 0.0
    %1557 = vmatpush1.msra.mxu0 0.0
    %1558 = vmatprep.mubr.f32.mxu0 0.0
    %1559 = vmatmul.mubr.f32.gmra.mrb[0].mxu0 %v1492
    %v1560 = vpop.f32.mrb[0].mxu0
    %v1561 = vadd.f32 0.0, %v1560
    %v1562 = vpop.f32.mrb[0].mxu0
    %1563 = vdwg.mxu0
    %1564 = vrot.lane.b32.xlu0 %v213, 64
    %v1565 = vpop.permute.xlu0 %1564
    %v1568 = vsel %vm689, %v1335, 0
    %1570 = vmatprep.subr.mxu0 0.0
    %1571 = vmatpush1.msra.mxu0 %v1565
    %1572 = vmatprep.subr.mxu0 0.0
    %1573 = vmatpush1.msra.mxu0 0.0
    %1574 = vmatprep.subr.mxu0 0.0
    %1575 = vmatpush1.msra.mxu0 0.0
    %1576 = vmatprep.subr.mxu0 0.0
    %1577 = vmatpush1.msra.mxu0 0.0
    %1578 = vmatprep.subr.mxu0 0.0
    %1579 = vmatpush1.msra.mxu0 0.0
    %1580 = vmatprep.subr.mxu0 0.0
    %1581 = vmatpush1.msra.mxu0 0.0
    %1582 = vmatprep.subr.mxu0 0.0
    %1583 = vmatpush1.msra.mxu0 0.0
    %1584 = vmatprep.subr.mxu0 0.0
    %1585 = vmatpush1.msra.mxu0 0.0
    %1586 = vmatprep.subr.mxu0 0.0
    %1587 = vmatpush1.msra.mxu0 0.0
    %1588 = vmatprep.subr.mxu0 0.0
    %1589 = vmatpush1.msra.mxu0 0.0
    %1590 = vmatprep.subr.mxu0 0.0
    %1591 = vmatpush1.msra.mxu0 0.0
    %1592 = vmatprep.subr.mxu0 0.0
    %1593 = vmatpush1.msra.mxu0 0.0
    %1594 = vmatprep.subr.mxu0 0.0
    %1595 = vmatpush1.msra.mxu0 0.0
    %1596 = vmatprep.subr.mxu0 0.0
    %1597 = vmatpush1.msra.mxu0 0.0
    %1598 = vmatprep.subr.mxu0 0.0
    %1599 = vmatpush1.msra.mxu0 0.0
    %1600 = vmatprep.subr.mxu0 0.0
    %1601 = vmatpush1.msra.mxu0 0.0
    %1602 = vmatprep.subr.mxu0 0.0
    %1603 = vmatpush1.msra.mxu0 0.0
    %1604 = vmatprep.subr.mxu0 0.0
    %1605 = vmatpush1.msra.mxu0 0.0
    %1606 = vmatprep.subr.mxu0 0.0
    %1607 = vmatpush1.msra.mxu0 0.0
    %1608 = vmatprep.subr.mxu0 0.0
    %1609 = vmatpush1.msra.mxu0 0.0
    %1610 = vmatprep.subr.mxu0 0.0
    %1611 = vmatpush1.msra.mxu0 0.0
    %1612 = vmatprep.subr.mxu0 0.0
    %1613 = vmatpush1.msra.mxu0 0.0
    %1614 = vmatprep.subr.mxu0 0.0
    %1615 = vmatpush1.msra.mxu0 0.0
    %1616 = vmatprep.subr.mxu0 0.0
    %1617 = vmatpush1.msra.mxu0 0.0
    %1618 = vmatprep.subr.mxu0 0.0
    %1619 = vmatpush1.msra.mxu0 0.0
    %1620 = vmatprep.subr.mxu0 0.0
    %1621 = vmatpush1.msra.mxu0 0.0
    %1622 = vmatprep.subr.mxu0 0.0
    %1623 = vmatpush1.msra.mxu0 0.0
    %1624 = vmatprep.subr.mxu0 0.0
    %1625 = vmatpush1.msra.mxu0 0.0
    %1626 = vmatprep.subr.mxu0 0.0
    %1627 = vmatpush1.msra.mxu0 0.0
    %1628 = vmatprep.subr.mxu0 0.0
    %1629 = vmatpush1.msra.mxu0 0.0
    %1630 = vmatprep.subr.mxu0 0.0
    %1631 = vmatpush1.msra.mxu0 0.0
    %1632 = vmatprep.subr.mxu0 0.0
    %1633 = vmatpush1.msra.mxu0 0.0
    %1634 = vmatprep.mubr.f32.mxu0 0.0
    %1635 = vmatmul.mubr.f32.gmra.mrb[0].mxu0 %v1568
    %v1636 = vpop.f32.mrb[0].mxu0
    %v1637 = vadd.f32 0.0, %v1636
    %v1638 = vpop.f32.mrb[0].mxu0
    %1639 = vdwg.mxu0
    %1642 = vrot.lane.b32.xlu0 %v1561, 16
    %v1643 = vpop.permute.xlu0 %1642
    %1644 = vrot.lane.b32.xlu0 %v1637, 16
    %v1645 = vpop.permute.xlu0 %1644
    %v1648 = vsel %vm194, %v1409, %v1643
    %v1649 = vsel %vm194, %v1485, %v1645
    %v1650 = vld [vmem:[%s6] sm:$0xff]
    %v1651 = vld [vmem:[%s6 + $0x8] sm:$0xff]
    %v1652 = vld [vmem:[%s6 + $0x10] sm:$0xff]
    %v1653 = vld [vmem:[%s6 + $0x18] sm:$0xff]
    %v1655 = vsel %vm108, %v1648, 0
    %v1658 = vsel %vm108, %v1649, 0
    %1660 = vmatprep.subr.mxu0 0.0
    %1661 = vmatpush1.msra.mxu0 %v1650
    %1662 = vmatprep.subr.mxu0 0.0
    %1663 = vmatpush1.msra.mxu0 %v1651
    %1664 = vmatprep.subr.mxu0 0.0
    %1665 = vmatpush1.msra.mxu0 %v1652
    %1666 = vmatprep.subr.mxu0 0.0
    %1667 = vmatpush1.msra.mxu0 %v1653
    %1668 = vmatprep.subr.mxu0 0.0
    %1669 = vmatpush1.msra.mxu0 0.0
    %1670 = vmatprep.subr.mxu0 0.0
    %1671 = vmatpush1.msra.mxu0 0.0
    %1672 = vmatprep.subr.mxu0 0.0
    %1673 = vmatpush1.msra.mxu0 0.0
    %1674 = vmatprep.subr.mxu0 0.0
    %1675 = vmatpush1.msra.mxu0 0.0
    %1676 = vmatprep.subr.mxu0 0.0
    %1677 = vmatpush1.msra.mxu0 0.0
    %1678 = vmatprep.subr.mxu0 0.0
    %1679 = vmatpush1.msra.mxu0 0.0
    %1680 = vmatprep.subr.mxu0 0.0
    %1681 = vmatpush1.msra.mxu0 0.0
    %1682 = vmatprep.subr.mxu0 0.0
    %1683 = vmatpush1.msra.mxu0 0.0
    %1684 = vmatprep.subr.mxu0 0.0
    %1685 = vmatpush1.msra.mxu0 0.0
    %1686 = vmatprep.subr.mxu0 0.0
    %1687 = vmatpush1.msra.mxu0 0.0
    %1688 = vmatprep.subr.mxu0 0.0
    %1689 = vmatpush1.msra.mxu0 0.0
    %1690 = vmatprep.subr.mxu0 0.0
    %1691 = vmatpush1.msra.mxu0 0.0
    %1692 = vmatprep.subr.mxu0 0.0
    %1693 = vmatpush1.msra.mxu0 0.0
    %1694 = vmatprep.subr.mxu0 0.0
    %1695 = vmatpush1.msra.mxu0 0.0
    %1696 = vmatprep.subr.mxu0 0.0
    %1697 = vmatpush1.msra.mxu0 0.0
    %1698 = vmatprep.subr.mxu0 0.0
    %1699 = vmatpush1.msra.mxu0 0.0
    %1700 = vmatprep.subr.mxu0 0.0
    %1701 = vmatpush1.msra.mxu0 0.0
    %1702 = vmatprep.subr.mxu0 0.0
    %1703 = vmatpush1.msra.mxu0 0.0
    %1704 = vmatprep.subr.mxu0 0.0
    %1705 = vmatpush1.msra.mxu0 0.0
    %1706 = vmatprep.subr.mxu0 0.0
    %1707 = vmatpush1.msra.mxu0 0.0
    %1708 = vmatprep.subr.mxu0 0.0
    %1709 = vmatpush1.msra.mxu0 0.0
    %1710 = vmatprep.subr.mxu0 0.0
    %1711 = vmatpush1.msra.mxu0 0.0
    %1712 = vmatprep.subr.mxu0 0.0
    %1713 = vmatpush1.msra.mxu0 0.0
    %1714 = vmatprep.subr.mxu0 0.0
    %1715 = vmatpush1.msra.mxu0 0.0
    %1716 = vmatprep.subr.mxu0 0.0
    %1717 = vmatpush1.msra.mxu0 0.0
    %1718 = vmatprep.subr.mxu0 0.0
    %1719 = vmatpush1.msra.mxu0 0.0
    %1720 = vmatprep.subr.mxu0 0.0
    %1721 = vmatpush1.msra.mxu0 0.0
    %1722 = vmatprep.subr.mxu0 0.0
    %1723 = vmatpush1.msra.mxu0 0.0
    %1724 = vmatprep.mubr.f32.mxu0 0.0
    %1725 = vmatmul.mubr.f32.gmra.mrb[0].mxu0 %v1655
    %v1726 = vpop.f32.mrb[0].mxu0
    %v1727 = vadd.f32 0.0, %v1726
    %v1728 = vpop.f32.mrb[0].mxu0
    %1729 = vmatprep.mubr.f32.mxu0 0.0
    %1730 = vmatmul.mubr.f32.gmra.mrb[0].mxu0 %v1658
    %v1731 = vpop.f32.mrb[0].mxu0
    %v1732 = vadd.f32 0.0, %v1731
    %v1733 = vpop.f32.mrb[0].mxu0
    %1734 = vdwg.mxu0
    %v1735 = vadd.f32 %v87, %v1727
    %v1736 = vadd.f32 %v102, %v1732
    %v1737 = vld [vmem:[%s7] sm:$0x1]
    %v1738 = vld [vmem:[%s8] sm:$0x1]
    %v1739 = vsel %vm108, %v1735, 0.0
    %1740 = vadd.xlane.f32.xlu0 %v1739
    %v1741 = vpop.xlane.xlu0 %1740
    %v1742 = vsel %vm108, %v1736, 0.0
    %1743 = vadd.xlane.f32.xlu0 %v1742
    %v1744 = vpop.xlane.xlu0 %1743
    %v1745 = vrcp.pop 32.0
    %v1746 = vmul.f32 %v1741, %v1745
    %v1747 = vmul.f32 %v1744, %v1745
    %v1748 = vsub.f32 %v1735, %v1746
    %v1749 = vsub.f32 %v1736, %v1747
    %v1750 = vmul.f32 %v1748, %v1748
    %v1751 = vmul.f32 %v1749, %v1749
    %v1752 = vsel %vm108, %v1750, 0.0
    %1753 = vadd.xlane.f32.xlu0 %v1752
    %v1754 = vpop.xlane.xlu0 %1753
    %v1755 = vsel %vm108, %v1751, 0.0
    %1756 = vadd.xlane.f32.xlu0 %v1755
    %v1757 = vpop.xlane.xlu0 %1756
    %v1758 = vmul.f32 %v1754, %v1745
    %v1759 = vmul.f32 %v1757, %v1745
    %v1760 = vadd.f32 %v1758, 1e-05
    %v1761 = vadd.f32 %v1759, 1e-05
    %v1762 = vrsqrt.pop %v1760
    %v1763 = vrsqrt.pop %v1761
    %v1764 = vmul.f32 %v1748, %v1762
    %v1765 = vmul.f32 %v1749, %v1763
    %v1767 = vlaneseq
    %v1768 = vshrl.u32 %v1767, 7
    %v1769 = vsub.s32 0, %v1768
    %v1770 = vrot.slane %v1737, %v1769
    %v1772 = vmul.f32 %v1764, %v1770
    %v1773 = vmul.f32 %v1765, %v1770
    %v1775 = vlaneseq
    %v1776 = vshrl.u32 %v1775, 7
    %v1777 = vsub.s32 0, %v1776
    %v1778 = vrot.slane %v1738, %v1777
    %v1780 = vadd.f32 %v1772, %v1778
    %v1781 = vadd.f32 %v1773, %v1778
    %v1782 = vld [vmem:[%s9] sm:$0xff]
    %v1783 = vld [vmem:[%s9 + $0x8] sm:$0xff]
    %v1784 = vld [vmem:[%s9 + $0x10] sm:$0xff]
    %v1785 = vld [vmem:[%s9 + $0x18] sm:$0xff]
    %v1786 = vld [vmem:[%s10] sm:$0x1]
    %v1788 = vlaneseq
    %v1789 = vshrl.u32 %v1788, 7
    %v1790 = vsub.s32 0, %v1789
    %v1791 = vrot.slane %v1786, %v1790
    %v1794 = vsel %vm108, %v1780, 0
    %v1797 = vsel %vm108, %v1781, 0
    %1799 = vmatprep.subr.mxu0 0.0
    %1800 = vmatpush1.msra.mxu0 %v1782
    %1801 = vmatprep.subr.mxu0 0.0
    %1802 = vmatpush1.msra.mxu0 %v1783
    %1803 = vmatprep.subr.mxu0 0.0
    %1804 = vmatpush1.msra.mxu0 %v1784
    %1805 = vmatprep.subr.mxu0 0.0
    %1806 = vmatpush1.msra.mxu0 %v1785
    %1807 = vmatprep.subr.mxu0 0.0
    %1808 = vmatpush1.msra.mxu0 0.0
    %1809 = vmatprep.subr.mxu0 0.0
    %1810 = vmatpush1.msra.mxu0 0.0
    %1811 = vmatprep.subr.mxu0 0.0
    %1812 = vmatpush1.msra.mxu0 0.0
    %1813 = vmatprep.subr.mxu0 0.0
    %1814 = vmatpush1.msra.mxu0 0.0
    %1815 = vmatprep.subr.mxu0 0.0
    %1816 = vmatpush1.msra.mxu0 0.0
    %1817 = vmatprep.subr.mxu0 0.0
    %1818 = vmatpush1.msra.mxu0 0.0
    %1819 = vmatprep.subr.mxu0 0.0
    %1820 = vmatpush1.msra.mxu0 0.0
    %1821 = vmatprep.subr.mxu0 0.0
    %1822 = vmatpush1.msra.mxu0 0.0
    %1823 = vmatprep.subr.mxu0 0.0
    %1824 = vmatpush1.msra.mxu0 0.0
    %1825 = vmatprep.subr.mxu0 0.0
    %1826 = vmatpush1.msra.mxu0 0.0
    %1827 = vmatprep.subr.mxu0 0.0
    %1828 = vmatpush1.msra.mxu0 0.0
    %1829 = vmatprep.subr.mxu0 0.0
    %1830 = vmatpush1.msra.mxu0 0.0
    %1831 = vmatprep.subr.mxu0 0.0
    %1832 = vmatpush1.msra.mxu0 0.0
    %1833 = vmatprep.subr.mxu0 0.0
    %1834 = vmatpush1.msra.mxu0 0.0
    %1835 = vmatprep.subr.mxu0 0.0
    %1836 = vmatpush1.msra.mxu0 0.0
    %1837 = vmatprep.subr.mxu0 0.0
    %1838 = vmatpush1.msra.mxu0 0.0
    %1839 = vmatprep.subr.mxu0 0.0
    %1840 = vmatpush1.msra.mxu0 0.0
    %1841 = vmatprep.subr.mxu0 0.0
    %1842 = vmatpush1.msra.mxu0 0.0
    %1843 = vmatprep.subr.mxu0 0.0
    %1844 = vmatpush1.msra.mxu0 0.0
    %1845 = vmatprep.subr.mxu0 0.0
    %1846 = vmatpush1.msra.mxu0 0.0
    %1847 = vmatprep.subr.mxu0 0.0
    %1848 = vmatpush1.msra.mxu0 0.0
    %1849 = vmatprep.subr.mxu0 0.0
    %1850 = vmatpush1.msra.mxu0 0.0
    %1851 = vmatprep.subr.mxu0 0.0
    %1852 = vmatpush1.msra.mxu0 0.0
    %1853 = vmatprep.subr.mxu0 0.0
    %1854 = vmatpush1.msra.mxu0 0.0
    %1855 = vmatprep.subr.mxu0 0.0
    %1856 = vmatpush1.msra.mxu0 0.0
    %1857 = vmatprep.subr.mxu0 0.0
    %1858 = vmatpush1.msra.mxu0 0.0
    %1859 = vmatprep.subr.mxu0 0.0
    %1860 = vmatpush1.msra.mxu0 0.0
    %1861 = vmatprep.subr.mxu0 0.0
    %1862 = vmatpush1.msra.mxu0 0.0
    %1863 = vmatprep.mubr.f32.mxu0 0.0
    %1864 = vmatmul.mubr.f32.gmra.mrb[0].mxu0 %v1794
    %v1865 = vpop.f32.mrb[0].mxu0
    %v1866 = vadd.f32 %v1791, %v1865
    %v1867 = vpop.f32.mrb[0].mxu0
    %1868 = vmatprep.mubr.f32.mxu0 0.0
    %1869 = vmatmul.mubr.f32.gmra.mrb[0].mxu0 %v1797
    %v1870 = vpop.f32.mrb[0].mxu0
    %v1871 = vadd.f32 %v1791, %v1870
    %v1872 = vpop.f32.mrb[0].mxu0
    %1873 = vdwg.mxu0
    %v1874 = vmax.f32 %v1866, 0.0
    %v1875 = vmax.f32 %v1871, 0.0
    %v1876 = vld [vmem:[%s11] sm:$0xff]
    %v1877 = vld [vmem:[%s11 + $0x8] sm:$0xff]
    %v1878 = vld [vmem:[%s11 + $0x10] sm:$0xff]
    %v1879 = vld [vmem:[%s11 + $0x18] sm:$0xff]
    %v1880 = vld [vmem:[%s11 + $0x20] sm:$0xff]
    %v1881 = vld [vmem:[%s11 + $0x28] sm:$0xff]
    %v1882 = vld [vmem:[%s11 + $0x30] sm:$0xff]
    %v1883 = vld [vmem:[%s11 + $0x38] sm:$0xff]
    %v1884 = vld [vmem:[%s12] sm:$0x1]
    %v1886 = vlaneseq
    %v1887 = vshrl.u32 %v1886, 7
    %v1888 = vsub.s32 0, %v1887
    %v1889 = vrot.slane %v1884, %v1888
    %vm1891 = vcmask 523264
    %v1893 = vsel %vm1891, %v1874, 0
    %v1896 = vsel %vm1891, %v1875, 0
    %1898 = vmatprep.subr.mxu0 0.0
    %1899 = vmatpush1.msra.mxu0 %v1876
    %1900 = vmatprep.subr.mxu0 0.0
    %1901 = vmatpush1.msra.mxu0 %v1877
    %1902 = vmatprep.subr.mxu0 0.0
    %1903 = vmatpush1.msra.mxu0 %v1878
    %1904 = vmatprep.subr.mxu0 0.0
    %1905 = vmatpush1.msra.mxu0 %v1879
    %1906 = vmatprep.subr.mxu0 0.0
    %1907 = vmatpush1.msra.mxu0 %v1880
    %1908 = vmatprep.subr.mxu0 0.0
    %1909 = vmatpush1.msra.mxu0 %v1881
    %1910 = vmatprep.subr.mxu0 0.0
    %1911 = vmatpush1.msra.mxu0 %v1882
    %1912 = vmatprep.subr.mxu0 0.0
    %1913 = vmatpush1.msra.mxu0 %v1883
    %1914 = vmatprep.subr.mxu0 0.0
    %1915 = vmatpush1.msra.mxu0 0.0
    %1916 = vmatprep.subr.mxu0 0.0
    %1917 = vmatpush1.msra.mxu0 0.0
    %1918 = vmatprep.subr.mxu0 0.0
    %1919 = vmatpush1.msra.mxu0 0.0
    %1920 = vmatprep.subr.mxu0 0.0
    %1921 = vmatpush1.msra.mxu0 0.0
    %1922 = vmatprep.subr.mxu0 0.0
    %1923 = vmatpush1.msra.mxu0 0.0
    %1924 = vmatprep.subr.mxu0 0.0
    %1925 = vmatpush1.msra.mxu0 0.0
    %1926 = vmatprep.subr.mxu0 0.0
    %1927 = vmatpush1.msra.mxu0 0.0
    %1928 = vmatprep.subr.mxu0 0.0
    %1929 = vmatpush1.msra.mxu0 0.0
    %1930 = vmatprep.subr.mxu0 0.0
    %1931 = vmatpush1.msra.mxu0 0.0
    %1932 = vmatprep.subr.mxu0 0.0
    %1933 = vmatpush1.msra.mxu0 0.0
    %1934 = vmatprep.subr.mxu0 0.0
    %1935 = vmatpush1.msra.mxu0 0.0
    %1936 = vmatprep.subr.mxu0 0.0
    %1937 = vmatpush1.msra.mxu0 0.0
    %1938 = vmatprep.subr.mxu0 0.0
    %1939 = vmatpush1.msra.mxu0 0.0
    %1940 = vmatprep.subr.mxu0 0.0
    %1941 = vmatpush1.msra.mxu0 0.0
    %1942 = vmatprep.subr.mxu0 0.0
    %1943 = vmatpush1.msra.mxu0 0.0
    %1944 = vmatprep.subr.mxu0 0.0
    %1945 = vmatpush1.msra.mxu0 0.0
    %1946 = vmatprep.subr.mxu0 0.0
    %1947 = vmatpush1.msra.mxu0 0.0
    %1948 = vmatprep.subr.mxu0 0.0
    %1949 = vmatpush1.msra.mxu0 0.0
    %1950 = vmatprep.subr.mxu0 0.0
    %1951 = vmatpush1.msra.mxu0 0.0
    %1952 = vmatprep.subr.mxu0 0.0
    %1953 = vmatpush1.msra.mxu0 0.0
    %1954 = vmatprep.subr.mxu0 0.0
    %1955 = vmatpush1.msra.mxu0 0.0
    %1956 = vmatprep.subr.mxu0 0.0
    %1957 = vmatpush1.msra.mxu0 0.0
    %1958 = vmatprep.subr.mxu0 0.0
    %1959 = vmatpush1.msra.mxu0 0.0
    %1960 = vmatprep.subr.mxu0 0.0
    %1961 = vmatpush1.msra.mxu0 0.0
    %1962 = vmatprep.mubr.f32.mxu0 0.0
    %1963 = vmatmul.mubr.f32.gmra.mrb[0].mxu0 %v1893
    %v1964 = vpop.f32.mrb[0].mxu0
    %v1965 = vadd.f32 %v1889, %v1964
    %v1966 = vpop.f32.mrb[0].mxu0
    %1967 = vmatprep.mubr.f32.mxu0 0.0
    %1968 = vmatmul.mubr.f32.gmra.mrb[0].mxu0 %v1896
    %v1969 = vpop.f32.mrb[0].mxu0
    %v1970 = vadd.f32 %v1889, %v1969
    %v1971 = vpop.f32.mrb[0].mxu0
    %1972 = vdwg.mxu0
    %v1973 = vadd.f32 %v1780, %v1965
    %v1974 = vadd.f32 %v1781, %v1970
    %v1975 = vld [vmem:[%s13] sm:$0x1]
    %v1976 = vld [vmem:[%s14] sm:$0x1]
    %v1977 = vsel %vm108, %v1973, 0.0
    %1978 = vadd.xlane.f32.xlu0 %v1977
    %v1979 = vpop.xlane.xlu0 %1978
    %v1980 = vsel %vm108, %v1974, 0.0
    %1981 = vadd.xlane.f32.xlu0 %v1980
    %v1982 = vpop.xlane.xlu0 %1981
    %v1983 = vmul.f32 %v1979, %v1745
    %v1984 = vmul.f32 %v1982, %v1745
    %v1985 = vsub.f32 %v1973, %v1983
    %v1986 = vsub.f32 %v1974, %v1984
    %v1987 = vmul.f32 %v1985, %v1985
    %v1988 = vmul.f32 %v1986, %v1986
    %v1989 = vsel %vm108, %v1987, 0.0
    %1990 = vadd.xlane.f32.xlu0 %v1989
    %v1991 = vpop.xlane.xlu0 %1990
    %v1992 = vsel %vm108, %v1988, 0.0
    %1993 = vadd.xlane.f32.xlu0 %v1992
    %v1994 = vpop.xlane.xlu0 %1993
    %v1995 = vmul.f32 %v1991, %v1745
    %v1996 = vmul.f32 %v1994, %v1745
    %v1997 = vadd.f32 %v1995, 1e-05
    %v1998 = vadd.f32 %v1996, 1e-05
    %v1999 = vrsqrt.pop %v1997
    %v2000 = vrsqrt.pop %v1998
    %v2001 = vmul.f32 %v1985, %v1999
    %v2002 = vmul.f32 %v1986, %v2000
    %v2004 = vlaneseq
    %v2005 = vshrl.u32 %v2004, 7
    %v2006 = vsub.s32 0, %v2005
    %v2007 = vrot.slane %v1975, %v2006
    %v2009 = vmul.f32 %v2001, %v2007
    %v2010 = vmul.f32 %v2002, %v2007
    %v2012 = vlaneseq
    %v2013 = vshrl.u32 %v2012, 7
    %v2014 = vsub.s32 0, %v2013
    %v2015 = vrot.slane %v1976, %v2014
    %v2017 = vadd.f32 %v2009, %v2015
    %v2018 = vadd.f32 %v2010, %v2015
    %v2020 = vcombine.high %v2017, %v2017
    %v2022 = vunpack.c.l.s4 1966171168
    %v2023 = vunpack.c.0.s8 %v2022
    %v2024 = vlaneseq
    %v2025 = vshrl.u32 %v2024, 7
    %v2026 = vsub.s32 %v2023, %v2025
    %v2027 = vrot.slane %v2017, %v2026
    %v2029 = vunpack.c.l.s4 1966171168
    %v2030 = vunpack.c.0.s8 %v2029
    %v2031 = vlaneseq
    %v2032 = vshrl.u32 %v2031, 7
    %v2033 = vsub.s32 %v2030, %v2032
    %v2034 = vrot.slane %v2020, %v2033
    %v2035 = vcombine.high %v2027, %v2027
    %v2036 = vcombine.high %v2034, %v2034
    %v2038 = vunpack.c.l.s4 1966171168
    %v2039 = vunpack.c.0.s8 %v2038
    %v2040 = vlaneseq
    %v2041 = vshrl.u32 %v2040, 7
    %v2042 = vsub.s32 %v2039, %v2041
    %v2043 = vrot.slane %v2027, %v2042
    %v2045 = vunpack.c.l.s4 1966171168
    %v2046 = vunpack.c.0.s8 %v2045
    %v2047 = vlaneseq
    %v2048 = vshrl.u32 %v2047, 7
    %v2049 = vsub.s32 %v2046, %v2048
    %v2050 = vrot.slane %v2034, %v2049
    %v2052 = vunpack.c.l.s4 1966171168
    %v2053 = vunpack.c.0.s8 %v2052
    %v2054 = vlaneseq
    %v2055 = vshrl.u32 %v2054, 7
    %v2056 = vsub.s32 %v2053, %v2055
    %v2057 = vrot.slane %v2035, %v2056
    %v2059 = vunpack.c.l.s4 1966171168
    %v2060 = vunpack.c.0.s8 %v2059
    %v2061 = vlaneseq
    %v2062 = vshrl.u32 %v2061, 7
    %v2063 = vsub.s32 %v2060, %v2062
    %v2064 = vrot.slane %v2036, %v2063
    %v2065 = vcombine.high %v2043, %v2043
    %v2066 = vcombine.high %v2050, %v2050
    %v2067 = vcombine.high %v2057, %v2057
    %v2068 = vcombine.high %v2064, %v2064
    %vm2077 = vcmask 253952
    %2078 = vst.msk [vmem:[#allocation2] sm:$0x1] %vm2077, %v2043
    %2079 = vst.msk [vmem:[#allocation2 + $0x2] sm:$0x1] %vm2077, %v2057
    %2080 = vst.msk [vmem:[#allocation2 + $0x4] sm:$0x1] %vm2077, %v2065
    %2081 = vst.msk [vmem:[#allocation2 + $0x6] sm:$0x1] %vm2077, %v2067
    %2082 = vst.msk [vmem:[#allocation2 + $0x8] sm:$0x1] %vm2077, %v2050
    %2083 = vst.msk [vmem:[#allocation2 + $0xa] sm:$0x1] %vm2077, %v2064
    %2084 = vst.msk [vmem:[#allocation2 + $0xc] sm:$0x1] %vm2077, %v2066
    %2085 = vst.msk [vmem:[#allocation2 + $0xe] sm:$0x1] %vm2077, %v2068
    %v2087 = vcombine.high %v2018, %v2018
    %v2089 = vunpack.c.l.s4 1966171168
    %v2090 = vunpack.c.0.s8 %v2089
    %v2091 = vlaneseq
    %v2092 = vshrl.u32 %v2091, 7
    %v2093 = vsub.s32 %v2090, %v2092
    %v2094 = vrot.slane %v2018, %v2093
    %v2096 = vunpack.c.l.s4 1966171168
    %v2097 = vunpack.c.0.s8 %v2096
    %v2098 = vlaneseq
    %v2099 = vshrl.u32 %v2098, 7
    %v2100 = vsub.s32 %v2097, %v2099
    %v2101 = vrot.slane %v2087, %v2100
    %v2102 = vcombine.high %v2094, %v2094
    %v2103 = vcombine.high %v2101, %v2101
    %v2105 = vunpack.c.l.s4 1966171168
    %v2106 = vunpack.c.0.s8 %v2105
    %v2107 = vlaneseq
    %v2108 = vshrl.u32 %v2107, 7
    %v2109 = vsub.s32 %v2106, %v2108
    %v2110 = vrot.slane %v2094, %v2109
    %v2112 = vunpack.c.l.s4 1966171168
    %v2113 = vunpack.c.0.s8 %v2112
    %v2114 = vlaneseq
    %v2115 = vshrl.u32 %v2114, 7
    %v2116 = vsub.s32 %v2113, %v2115
    %v2117 = vrot.slane %v2101, %v2116
    %v2119 = vunpack.c.l.s4 1966171168
    %v2120 = vunpack.c.0.s8 %v2119
    %v2121 = vlaneseq
    %v2122 = vshrl.u32 %v2121, 7
    %v2123 = vsub.s32 %v2120, %v2122
    %v2124 = vrot.slane %v2102, %v2123
    %v2126 = vunpack.c.l.s4 1966171168
    %v2127 = vunpack.c.0.s8 %v2126
    %v2128 = vlaneseq
    %v2129 = vshrl.u32 %v2128, 7
    %v2130 = vsub.s32 %v2127, %v2129
    %v2131 = vrot.slane %v2103, %v2130
    %v2132 = vcombine.high %v2110, %v2110
    %v2133 = vcombine.high %v2117, %v2117
    %v2134 = vcombine.high %v2124, %v2124
    %v2135 = vcombine.high %v2131, %v2131
    %2144 = vst.msk [vmem:[#allocation2 + $0x1] sm:$0x1] %vm2077, %v2110
    %2145 = vst.msk [vmem:[#allocation2 + $0x3] sm:$0x1] %vm2077, %v2124
    %2146 = vst.msk [vmem:[#allocation2 + $0x5] sm:$0x1] %vm2077, %v2132
    %2147 = vst.msk [vmem:[#allocation2 + $0x7] sm:$0x1] %vm2077, %v2134
    %2148 = vst.msk [vmem:[#allocation2 + $0x9] sm:$0x1] %vm2077, %v2117
    %2149 = vst.msk [vmem:[#allocation2 + $0xb] sm:$0x1] %vm2077, %v2131
    %2150 = vst.msk [vmem:[#allocation2 + $0xd] sm:$0x1] %vm2077, %v2133
    %2151 = vst.msk [vmem:[#allocation2 + $0xf] sm:$0x1] %vm2077, %v2135
    // Predicated region
    $region62: #{rel_learnable_decoder_layer.1} parent=1 // pred_check
      _
    $region63: #{rel_learnable_decoder_layer.1} parent=1 // pred_check_branch
      %2153 = sbr.rel (0) target = $region65
    $region64: #{rel_learnable_decoder_layer.1} parent=1 // pred_region
      %s2155 = ssub.s32 256, 256
      %2156 = vsyncadd [#allocation3], %s2155
      %s2157 = sshll.u32 [#allocation2], 4
      %s2158 = int_to_ptr.vmem [resolvable:$true] %s2157
      %2163 = dma.vmem_to_hbm [thread:$0]  %s2158, 256, %s15, [#allocation3], 32, 32, 2
    $region65: #{rel_learnable_decoder_layer.1} parent=1 // pred_fallthru
      _
    // Predicated region
    $region66: #{rel_learnable_decoder_layer.1} parent=1 // pred_check
      _
    $region67: #{rel_learnable_decoder_layer.1} parent=1 // pred_check_branch
      %2165 = sbr.rel (0) target = $region69
    $region68: #{rel_learnable_decoder_layer.1} parent=1 // pred_region
      %2166 = dma.done [#allocation3], 256
    $region69: #{rel_learnable_decoder_layer.1} parent=1 // pred_fallthru
      _
    %2167 = vsyncpa [#allocation3], 1

</llo_original>
